<compile_context>
chip_gen: v7x
topology: tpu7x:2x2x1
jax: 0.10.0
libtpu: 0.0.40
codegen_flags: <defaults>
</compile_context>

<pallas_src>
import functools
import math

import jax
import jax.numpy as jnp
from jax.experimental import pallas as pl
from jax.experimental.pallas import tpu as pltpu


# --------------------------------------------------------------------------- kernel helpers


def _layernorm(x, a, b, eps):
    """a * (x - mean) / (std_unbiased + eps) + b, matching the PyTorch LayerNorm module."""
    feat = x.shape[-1]
    mean = jnp.mean(x, axis=-1, keepdims=True)
    xc = x - mean
    var = jnp.sum(xc * xc, axis=-1, keepdims=True) * (1.0 / max(feat - 1, 1))
    # Exact reciprocal here: the LN scale touches every activation (review concern).
    inv = 1.0 / (jnp.sqrt(var) + eps)
    return xc * (a * inv) + b


# --------------------------------------------------------------------------- kernel


def encoder_layer_kernel(
    x_ref,                                    # (S, D)     f32  (batch dim squeezed)
    wq_ref, bq_ref,                           # (D, Dh)    bf16 / (1, Dh)  f32  [scale folded]
    wkv_ref, bkv_ref,                         # (D, 2Dh)   bf16 / (1, 2Dh) f32
    wo_ref, bo_ref,                           # (Dh, D)    bf16 / (1, D)   f32
    w1_ref, b1_ref,                           # (D, Dff)   bf16 / (1, Dff) f32
    w2_ref, b2_ref,                           # (Dff, D)   bf16 / (1, D)   f32
    a1_ref, c1_ref, a2_ref, c2_ref,           # (1, D) f32 LayerNorm params
    o_ref,                                    # (tq, D)    f32  (batch dim squeezed)
    ctx_ref,                                  # (tq, Dh)   f32 VMEM scratch (per-head contexts)
    *, num_heads, dk_pad, q_tile, ff_chunk, eps,
):
    H = num_heads
    Dh = H * dk_pad
    tq = q_tile
    mm = wq_ref.dtype                         # MXU operand dtype (bf16); accumulation in f32

    x = x_ref[...]                            # (S, D) f32, full sequence for this batch elem
    S, D = x.shape
    Dff = w1_ref.shape[1]

    a1 = a1_ref[...]; c1 = c1_ref[...]
    a2 = a2_ref[...]; c2 = c2_ref[...]

    # ----- sublayer 0: multi-head self-attention on LN1(x) -----
    # LN1 + K/V are computed over the FULL sequence (attention needs every key/value row).
    # With more than one query tile this recomputes K/V per tile - accepted trade for
    # bounding the score working set to (tq, S).  For very long S, stream K/V flash-style.
    ln1 = _layernorm(x, a1, c1, eps)
    kv = jnp.dot(ln1.astype(mm), wkv_ref[...],
                 preferred_element_type=jnp.float32) + bkv_ref[...]          # (S, 2Dh) f32
    k_all = kv[:, 0:Dh]
    v_all = kv[:, Dh:2 * Dh]

    # Query rows for this grid step only.
    if tq == S:
        x_t, ln1_t = x, ln1
    else:
        q_start = pl.multiple_of(pl.program_id(1) * tq, tq)
        x_t = x_ref[pl.ds(q_start, tq), :]
        ln1_t = _layernorm(x_t, a1, c1, eps)
    q_t = jnp.dot(ln1_t.astype(mm), wq_ref[...],
                  preferred_element_type=jnp.float32) + bq_ref[...]          # (tq, Dh) f32

    # Per-head attention.  dk_pad is a multiple of 128, so every slice / store below is
    # lane-aligned.  The 1/sqrt(dk) scale is already folded into wq / bq (host side).
    for h in range(H):
        lo = h * dk_pad
        qh = q_t[:, lo:lo + dk_pad].astype(mm)
        kh = k_all[:, lo:lo + dk_pad].astype(mm)
        vh = v_all[:, lo:lo + dk_pad].astype(mm)
        # Contract on the shared last dim -> no explicit K transpose.
        s = jnp.einsum("qd,kd->qk", qh, kh,
                       preferred_element_type=jnp.float32)                  # (tq, S) f32
        s = s - jnp.max(s, axis=-1, keepdims=True)
        p = jnp.exp(s)                                                       # unnormalized
        inv = pl.reciprocal(jnp.sum(p, axis=-1, keepdims=True), approx=True)
        # Normalize the (tq, dk_pad) context instead of the (tq, S) probs; lane-aligned store.
        ctx_ref[:, lo:lo + dk_pad] = jnp.dot(p.astype(mm), vh,
                                             preferred_element_type=jnp.float32) * inv

    # ONE full-contraction output projection (K = Dh) instead of H rank-dk matmuls.
    attn = jnp.dot(ctx_ref[...].astype(mm), wo_ref[...],
                   preferred_element_type=jnp.float32)
    x1 = x_t + attn + bo_ref[...]             # residual (dropout is identity in eval)

    # ----- sublayer 1: position-wise feed-forward on LN2(x1), chunked over Dff -----
    ln2 = _layernorm(x1, a2, c2, eps)
    ln2_mm = ln2.astype(mm)
    ff = jnp.zeros((tq, D), jnp.float32)
    for c in range(Dff // ff_chunk):
        lo = c * ff_chunk
        hid = jnp.dot(ln2_mm, w1_ref[:, lo:lo + ff_chunk],
                      preferred_element_type=jnp.float32) + b1_ref[:, lo:lo + ff_chunk]
        hid = jnp.maximum(hid, 0.0)
        ff = ff + jnp.dot(hid.astype(mm), w2_ref[lo:lo + ff_chunk, :],
                          preferred_element_type=jnp.float32)

    o_ref[...] = x1 + ff + b2_ref[...]


# --------------------------------------------------------------------------- host-side helpers


@functools.lru_cache(maxsize=None)
def _supports_weight_single_buffering():
    """Explicit capability probe for pl.Buffered(1) on a constant-index weight block.

    This only probes the single feature on a trivial kernel; genuine errors from the real
    encoder kernel are never swallowed (review concern about the old broad fallback).
    """
    if not hasattr(pl, "Buffered"):
        return False

    def probe_kernel(x_ref, o_ref):
        o_ref[...] = x_ref[...] * 2.0

    try:
        spec = pl.BlockSpec((8, 128), lambda i: (0, 0), pipeline_mode=pl.Buffered(1))
        probe = pl.pallas_call(
            probe_kernel,
            out_shape=jax.ShapeDtypeStruct((8, 128), jnp.float32),
            grid=(1,),
            in_specs=[spec],
            out_specs=pl.BlockSpec((8, 128), lambda i: (0, 0)),
        )
        jax.block_until_ready(probe(jnp.ones((8, 128), jnp.float32)))
        return True
    except Exception:          # capability probe only - the real kernel never goes through here
        return False


def _vmem_cap_bytes():
    """Generation-aware scoped-VMEM cap: physical capacity with ~25% headroom."""
    cap = 64 * 1024 * 1024                            # conservative default: v7x physical VMEM
    try:
        cap = int(getattr(pltpu.get_tpu_info(), "vmem_capacity_bytes", cap))
    except Exception:                                 # hardware info query unavailable
        pass
    return (3 * cap) // 4                             # 128 MiB -> 96 MiB (v5e/v6e), 64 -> 48 (v7x)


def _pick_seq_tile(S, target=256):
    """Largest divisor of S that is a multiple of 8 and <= target, else the whole sequence."""
    if S <= target:
        return S
    for t in range(target - target % 8, 7, -8):
        if S % t == 0:
            return t
    return S


def _pick_ff_chunk(Dff, target=512):
    """Largest 128-multiple divisor of Dff that is <= target, else the whole Dff."""
    if Dff <= target:
        return Dff
    for t in range(target - target % 128, 127, -128):
        if Dff % t == 0:
            return t
    return Dff


def _vmem_bytes_estimate(S, D, Dff, Dh, tq, dff, w_itemsize, single_buffered_weights):
    """Per-step working set, including the bf16 MXU staging copies (review item)."""
    wbuf = 1 if single_buffered_weights else 2
    weights = wbuf * w_itemsize * (D * Dh + D * 2 * Dh + Dh * D + D * Dff + Dff * D)
    biases = wbuf * 4 * (Dh + 2 * Dh + 2 * D + Dff + 4 * D)
    io_blocks = 2 * 4 * (S * D + tq * D)              # double-buffered x / out slabs
    scratch = 4 * tq * Dh                             # ctx accumulator
    inter = (4 + 2) * S * D                           # ln1 f32 + bf16 staging
    inter += 4 * S * 2 * Dh + 2 * S * Dh              # kv f32 + one head's k/v bf16 staging
    inter += (4 + 2) * tq * Dh                        # q f32 + bf16 staging
    inter += (4 + 2) * tq * S                         # scores f32 + probs bf16 (one head live)
    inter += 2 * tq * Dh + 4 * tq * D                 # ctx bf16 staging + attn f32
    inter += (4 + 4 + 2 + 4) * tq * D                 # x1, ln2 f32, ln2 bf16, ff
    inter += (4 + 2) * tq * dff                       # FFN hidden f32 + bf16 (one chunk live)
    return weights + biases + io_blocks + scratch + inter


def prepare_encoder_params(params, *, num_heads, matmul_dtype=jnp.bfloat16):
    """Build-time weight packing (hoisted out of the per-call path, review item).

    Produces a head-major, 128-lane-padded Q/K/V layout with the softmax scale folded into
    wq/bq, a row-padded output projection, and bf16 MXU operand casts.
    """
    D = params["wq"].shape[0]
    Dff = params["w1"].shape[1]
    H = num_heads
    assert D % H == 0
    dk = D // H
    dk_pad = dk if dk % 128 == 0 else ((dk + 127) // 128) * 128
    scale = 1.0 / math.sqrt(dk)
    wdt = matmul_dtype
    f32 = jnp.float32

    def pad_cols(w, pre_scale=1.0):          # (D, D) -> (D, H*dk_pad), zero-padded per head
        w = (w * pre_scale).reshape(D, H, dk)
        w = jnp.pad(w, ((0, 0), (0, 0), (0, dk_pad - dk)))
        return w.reshape(D, H * dk_pad)

    def pad_bias(b, pre_scale=1.0):          # (1, D) -> (1, H*dk_pad)
        b = (b * pre_scale).reshape(1, H, dk)
        b = jnp.pad(b, ((0, 0), (0, 0), (0, dk_pad - dk)))
        return b.reshape(1, H * dk_pad)

    def pad_rows(w):                         # (D, D) -> (H*dk_pad, D), zero rows at pad slots
        w = w.reshape(H, dk, D)
        w = jnp.pad(w, ((0, 0), (0, dk_pad - dk), (0, 0)))
        return w.reshape(H * dk_pad, D)

    prepped = dict(
        wq=pad_cols(params["wq"], scale).astype(wdt),
        bq=pad_bias(params["bq"], scale).astype(f32),
        wkv=jnp.concatenate([pad_cols(params["wk"]), pad_cols(params["wv"])], axis=1).astype(wdt),
        bkv=jnp.concatenate([pad_bias(params["bk"]), pad_bias(params["bv"])], axis=1).astype(f32),
        wo=pad_rows(params["wo"]).astype(wdt),
        bo=params["bo"].astype(f32),
        w1=params["w1"].astype(wdt), b1=params["b1"].astype(f32),
        w2=params["w2"].astype(wdt), b2=params["b2"].astype(f32),
        ln1_a=params["ln1_a"].astype(f32), ln1_b=params["ln1_b"].astype(f32),
        ln2_a=params["ln2_a"].astype(f32), ln2_b=params["ln2_b"].astype(f32),
    )
    meta = dict(num_heads=H, dk_pad=dk_pad, D=D, Dff=Dff)
    return prepped, meta


# --------------------------------------------------------------------------- wrapper


def encoder_layer(x, prepped, meta, *, eps=1e-6, seq_tile=None, ff_chunk=None):
    """x: [B, S, D] float32; prepped/meta from prepare_encoder_params."""
    B, S, D = x.shape
    assert D == meta["D"]
    H = meta["num_heads"]
    dk_pad = meta["dk_pad"]
    Dff = meta["Dff"]
    Dh = H * dk_pad

    tq = seq_tile if seq_tile is not None else _pick_seq_tile(S)
    assert S % tq == 0
    dff = ff_chunk if ff_chunk is not None else _pick_ff_chunk(Dff)
    assert Dff % dff == 0

    single_buf = _supports_weight_single_buffering()
    sq = getattr(pl, "squeezed", None)       # squeeze the leading size-1 batch dim of x / out

    def const_spec(shape):
        nd = len(shape)
        kwargs = {"pipeline_mode": pl.Buffered(1)} if single_buf else {}
        return pl.BlockSpec(shape, lambda b, q: (0,) * nd, **kwargs)

    in_specs = [
        pl.BlockSpec((sq, S, D), lambda b, q: (b, 0, 0)),          # x (full sequence per batch)
        const_spec((D, Dh)), const_spec((1, Dh)),                  # wq (scale folded), bq
        const_spec((D, 2 * Dh)), const_spec((1, 2 * Dh)),          # wkv, bkv
        const_spec((Dh, D)), const_spec((1, D)),                   # wo (row-padded), bo
        const_spec((D, Dff)), const_spec((1, Dff)),                # w1, b1
        const_spec((Dff, D)), const_spec((1, D)),                  # w2, b2
        const_spec((1, D)), const_spec((1, D)),                    # ln1 a, b
        const_spec((1, D)), const_spec((1, D)),                    # ln2 a, b
    ]
    out_spec = pl.BlockSpec((sq, tq, D), lambda b, q: (b, q, 0))

    w_itemsize = jnp.dtype(prepped["wq"].dtype).itemsize
    need = _vmem_bytes_estimate(S, D, Dff, Dh, tq, dff, w_itemsize, single_buf)
    vmem_limit = min(_vmem_cap_bytes(), max(16 * 1024 * 1024, int(need * 1.4)))

    kernel = functools.partial(
        encoder_layer_kernel,
        num_heads=H, dk_pad=dk_pad, q_tile=tq, ff_chunk=dff, eps=eps)

    return pl.pallas_call(
        kernel,
        out_shape=jax.ShapeDtypeStruct((B, S, D), jnp.float32),
        grid_spec=pltpu.PrefetchScalarGridSpec(
            num_scalar_prefetch=0,
            grid=(B, S // tq),
            in_specs=in_specs,
            out_specs=out_spec,
            scratch_shapes=[pltpu.VMEM((tq, Dh), jnp.float32)],
        ),
        compiler_params=pltpu.CompilerParams(
            dimension_semantics=("parallel", "parallel"),
            vmem_limit_bytes=int(vmem_limit),
        ),
    )(
        x.astype(jnp.float32),
        prepped["wq"], prepped["bq"], prepped["wkv"], prepped["bkv"],
        prepped["wo"], prepped["bo"],
        prepped["w1"], prepped["b1"], prepped["w2"], prepped["b2"],
        prepped["ln1_a"], prepped["ln1_b"], prepped["ln2_a"], prepped["ln2_b"],
    )


# --------------------------------------------------------------------------- reference & test


def init_params(key, D, Dff):
    ks = jax.random.split(key, 12)

    def lin(k, fan_in, shape):
        return jax.random.normal(k, shape, jnp.float32) * (1.0 / math.sqrt(fan_in))

    def bias(k, n):
        return 0.1 * jax.random.normal(k, (1, n), jnp.float32)

    return {
        "wq": lin(ks[0], D, (D, D)), "bq": bias(ks[6], D),
        "wk": lin(ks[1], D, (D, D)), "bk": bias(ks[7], D),
        "wv": lin(ks[2], D, (D, D)), "bv": bias(ks[8], D),
        "wo": lin(ks[3], D, (D, D)), "bo": bias(ks[9], D),
        "w1": lin(ks[4], D, (D, Dff)), "b1": bias(ks[10], Dff),
        "w2": lin(ks[5], Dff, (Dff, D)), "b2": bias(ks[11], D),
        "ln1_a": jnp.ones((1, D), jnp.float32), "ln1_b": jnp.zeros((1, D), jnp.float32),
        "ln2_a": jnp.ones((1, D), jnp.float32), "ln2_b": jnp.zeros((1, D), jnp.float32),
    }


def encoder_layer_reference(x, params, *, num_heads, eps=1e-6, matmul_dtype=jnp.float32):
    """Pure-JAX reference (same matmul operand precision as the kernel when requested)."""

    def mm(a, b):
        return jnp.dot(a.astype(matmul_dtype), b.astype(matmul_dtype),
                       preferred_element_type=jnp.float32)

    def ln(t, a, b):
        mean = t.mean(-1, keepdims=True)
        var = jnp.sum((t - mean) ** 2, -1, keepdims=True) / (t.shape[-1] - 1)
        return a * (t - mean) / (jnp.sqrt(var) + eps) + b

    B, S, D = x.shape
    dk = D // num_heads
    h1 = ln(x, params["ln1_a"], params["ln1_b"])
    q = mm(h1, params["wq"]) + params["bq"]
    k = mm(h1, params["wk"]) + params["bk"]
    v = mm(h1, params["wv"]) + params["bv"]

    def split(t):
        return t.reshape(B, S, num_heads, dk).transpose(0, 2, 1, 3)

    qh, kh, vh = split(q), split(k), split(v)
    s = jnp.einsum("bhqd,bhkd->bhqk", qh.astype(matmul_dtype), kh.astype(matmul_dtype),
                   preferred_element_type=jnp.float32) / math.sqrt(dk)
    p = jax.nn.softmax(s, axis=-1)
    ctx = jnp.einsum("bhqk,bhkd->bhqd", p.astype(matmul_dtype), vh.astype(matmul_dtype),
                     preferred_element_type=jnp.float32)
    ctx = ctx.transpose(0, 2, 1, 3).reshape(B, S, D)
    x1 = x + mm(ctx, params["wo"]) + params["bo"]
    h2 = ln(x1, params["ln2_a"], params["ln2_b"])
    ff = mm(jnp.maximum(mm(h2, params["w1"]) + params["b1"], 0.0),
            params["w2"]) + params["b2"]
    return x1 + ff


if __name__ == "__main__":
    B, S, D, H, Dff = 2, 8, 32, 4, 64
    key = jax.random.PRNGKey(0)
    kx, kp = jax.random.split(key)
    x = jax.random.normal(kx, (B, S, D), jnp.float32)
    params = init_params(kp, D, Dff)

    # Build-time weight packing (done once; not part of the per-call path).
    prepped, meta = prepare_encoder_params(params, num_heads=H)

    out = encoder_layer(x, prepped, meta)
    out = jax.block_until_ready(out)
    assert out.shape == (B, S, D)

    # Compare against a pure-JAX reference using the same bf16 matmul operand precision
    # (remaining deltas: bf16 rounding of the folded softmax scale, approx softmax
    #  reciprocal and accumulation order).
    ref = encoder_layer_reference(x, params, num_heads=H, matmul_dtype=jnp.bfloat16)
    assert bool(jnp.allclose(out, ref, atol=5e-2, rtol=5e-2)), "kernel/reference mismatch"

    print("KERNEL_OK")
</pallas_src>

<mosaic_0001>
module attributes {stable_mosaic.version = 11 : i64} {
  func.func @probe_kernel(%arg0: i32, %arg1: memref<8x128xf32, #tpu.memory_space<vmem>>, %arg2: memref<8x128xf32, #tpu.memory_space<vmem>>) attributes {dimension_semantics = [#tpu.dimension_semantics<arbitrary>], iteration_bounds = array<i64: 1>, scalar_prefetch = 0 : i64, scratch_operands = 0 : i64, tpu.core_type = #tpu.core_type<tc>, window_params = [{pipeline_mode = #tpu.pipeline_mode<synchronous>, transform_indices = @transform_0, window_bounds = array<i64: 8, 128>}, {pipeline_mode = #tpu.pipeline_mode<synchronous>, transform_indices = @transform_1, window_bounds = array<i64: 8, 128>}]} {
    %c0 = arith.constant 0 : index
    %c0_0 = arith.constant 0 : index
    %0 = vector.load %arg1[%c0, %c0_0] : memref<8x128xf32, #tpu.memory_space<vmem>>, vector<8x128xf32>
    %cst = arith.constant 2.000000e+00 : f32
    %1 = vector.broadcast %cst : f32 to vector<8x128xf32>
    %2 = arith.mulf %0, %1 : vector<8x128xf32>
    %c0_1 = arith.constant 0 : index
    %c0_2 = arith.constant 0 : index
    %3 = vector.load %arg2[%c0_1, %c0_2] : memref<8x128xf32, #tpu.memory_space<vmem>>, vector<8x128xf32>
    tpu.vector_store %arg2[%c0_1, %c0_2], %2 {strides = array<i32>} : memref<8x128xf32, #tpu.memory_space<vmem>>, vector<8x128xf32>,
    return
  }
  func.func @transform_0(%arg0: i32) -> (i32, i32) {
    %c0_i32 = arith.constant 0 : i32
    %c0_i32_0 = arith.constant 0 : i32
    %c0_i32_1 = arith.constant 0 : i32
    return %c0_i32, %c0_i32_0 : i32, i32
  }
  func.func @transform_1(%arg0: i32) -> (i32, i32) {
    %c0_i32 = arith.constant 0 : i32
    %c0_i32_0 = arith.constant 0 : i32
    %c0_i32_1 = arith.constant 0 : i32
    return %c0_i32, %c0_i32_0 : i32, i32
  }
}

module attributes {stable_mosaic.version = 11 : i64} {
  func.func @encoder_layer_kernel(%arg0: i32, %arg1: i32, %arg2: memref<1x8x32xf32, #tpu.memory_space<vmem>>, %arg3: memref<32x512xbf16, #tpu.memory_space<vmem>>, %arg4: memref<1x512xf32, #tpu.memory_space<vmem>>, %arg5: memref<32x1024xbf16, #tpu.memory_space<vmem>>, %arg6: memref<1x1024xf32, #tpu.memory_space<vmem>>, %arg7: memref<512x32xbf16, #tpu.memory_space<vmem>>, %arg8: memref<1x32xf32, #tpu.memory_space<vmem>>, %arg9: memref<32x64xbf16, #tpu.memory_space<vmem>>, %arg10: memref<1x64xf32, #tpu.memory_space<vmem>>, %arg11: memref<64x32xbf16, #tpu.memory_space<vmem>>, %arg12: memref<1x32xf32, #tpu.memory_space<vmem>>, %arg13: memref<1x32xf32, #tpu.memory_space<vmem>>, %arg14: memref<1x32xf32, #tpu.memory_space<vmem>>, %arg15: memref<1x32xf32, #tpu.memory_space<vmem>>, %arg16: memref<1x32xf32, #tpu.memory_space<vmem>>, %arg17: memref<1x8x32xf32, #tpu.memory_space<vmem>>, %arg18: memref<8x512xf32, #tpu.memory_space<vmem>>) attributes {dimension_semantics = [#tpu.dimension_semantics<parallel>, #tpu.dimension_semantics<parallel>], iteration_bounds = array<i64: 2, 1>, scalar_prefetch = 0 : i64, scratch_operands = 1 : i64, tpu.core_type = #tpu.core_type<tc>, window_params = [{transform_indices = @transform_0, window_bounds = array<i64: 1, 8, 32>}, {pipeline_mode = #tpu.pipeline_mode<synchronous>, transform_indices = @transform_1, window_bounds = array<i64: 32, 512>}, {pipeline_mode = #tpu.pipeline_mode<synchronous>, transform_indices = @transform_2, window_bounds = array<i64: 1, 512>}, {pipeline_mode = #tpu.pipeline_mode<synchronous>, transform_indices = @transform_3, window_bounds = array<i64: 32, 1024>}, {pipeline_mode = #tpu.pipeline_mode<synchronous>, transform_indices = @transform_4, window_bounds = array<i64: 1, 1024>}, {pipeline_mode = #tpu.pipeline_mode<synchronous>, transform_indices = @transform_5, window_bounds = array<i64: 512, 32>}, {pipeline_mode = #tpu.pipeline_mode<synchronous>, transform_indices = @transform_6, window_bounds = array<i64: 1, 32>}, {pipeline_mode = #tpu.pipeline_mode<synchronous>, transform_indices = @transform_7, window_bounds = array<i64: 32, 64>}, {pipeline_mode = #tpu.pipeline_mode<synchronous>, transform_indices = @transform_8, window_bounds = array<i64: 1, 64>}, {pipeline_mode = #tpu.pipeline_mode<synchronous>, transform_indices = @transform_9, window_bounds = array<i64: 64, 32>}, {pipeline_mode = #tpu.pipeline_mode<synchronous>, transform_indices = @transform_10, window_bounds = array<i64: 1, 32>}, {pipeline_mode = #tpu.pipeline_mode<synchronous>, transform_indices = @transform_11, window_bounds = array<i64: 1, 32>}, {pipeline_mode = #tpu.pipeline_mode<synchronous>, transform_indices = @transform_12, window_bounds = array<i64: 1, 32>}, {pipeline_mode = #tpu.pipeline_mode<synchronous>, transform_indices = @transform_13, window_bounds = array<i64: 1, 32>}, {pipeline_mode = #tpu.pipeline_mode<synchronous>, transform_indices = @transform_14, window_bounds = array<i64: 1, 32>}, {transform_indices = @transform_15, window_bounds = array<i64: 1, 8, 32>}]} {
    %c0 = arith.constant 0 : index
    %c0_0 = arith.constant 0 : index
    %c0_1 = arith.constant 0 : index
    %0 = vector.load %arg2[%c0, %c0_0, %c0_1] : memref<1x8x32xf32, #tpu.memory_space<vmem>>, vector<1x8x32xf32>
    %1 = vector.shape_cast %0 : vector<1x8x32xf32> to vector<8x32xf32>
    %c0_2 = arith.constant 0 : index
    %c0_3 = arith.constant 0 : index
    %2 = vector.load %arg13[%c0_2, %c0_3] : memref<1x32xf32, #tpu.memory_space<vmem>>, vector<1x32xf32>
    %c0_4 = arith.constant 0 : index
    %c0_5 = arith.constant 0 : index
    %3 = vector.load %arg14[%c0_4, %c0_5] : memref<1x32xf32, #tpu.memory_space<vmem>>, vector<1x32xf32>
    %c0_6 = arith.constant 0 : index
    %c0_7 = arith.constant 0 : index
    %4 = vector.load %arg15[%c0_6, %c0_7] : memref<1x32xf32, #tpu.memory_space<vmem>>, vector<1x32xf32>
    %c0_8 = arith.constant 0 : index
    %c0_9 = arith.constant 0 : index
    %5 = vector.load %arg16[%c0_8, %c0_9] : memref<1x32xf32, #tpu.memory_space<vmem>>, vector<1x32xf32>
    %cst = arith.constant dense<0.000000e+00> : vector<8xf32>
    %6 = vector.multi_reduction <add>, %1, %cst [1] : vector<8x32xf32> to vector<8xf32>
    %7 = vector.shape_cast %6 : vector<8xf32> to vector<8x1xf32>
    %cst_10 = arith.constant 3.200000e+01 : f32
    %8 = vector.broadcast %cst_10 : f32 to vector<8x1xf32>
    %9 = arith.divf %7, %8 : vector<8x1xf32>
    %10 = vector.broadcast %9 : vector<8x1xf32> to vector<8x32xf32>
    %11 = arith.subf %1, %10 : vector<8x32xf32>
    %12 = arith.mulf %11, %11 : vector<8x32xf32>
    %cst_11 = arith.constant dense<0.000000e+00> : vector<8xf32>
    %13 = vector.multi_reduction <add>, %12, %cst_11 [1] : vector<8x32xf32> to vector<8xf32>
    %14 = vector.shape_cast %13 : vector<8xf32> to vector<8x1xf32>
    %cst_12 = arith.constant 0.0322580636 : f32
    %15 = vector.broadcast %cst_12 : f32 to vector<8x1xf32>
    %16 = arith.mulf %14, %15 : vector<8x1xf32>
    %17 = math.sqrt %16 : vector<8x1xf32>
    %cst_13 = arith.constant 9.99999997E-7 : f32
    %18 = vector.broadcast %cst_13 : f32 to vector<8x1xf32>
    %19 = arith.addf %17, %18 : vector<8x1xf32>
    %cst_14 = arith.constant 1.000000e+00 : f32
    %20 = vector.broadcast %cst_14 : f32 to vector<8x1xf32>
    %21 = arith.divf %20, %19 : vector<8x1xf32>
    %22 = vector.broadcast %2 : vector<1x32xf32> to vector<8x32xf32>
    %23 = vector.broadcast %21 : vector<8x1xf32> to vector<8x32xf32>
    %24 = arith.mulf %22, %23 : vector<8x32xf32>
    %25 = arith.mulf %11, %24 : vector<8x32xf32>
    %26 = vector.broadcast %3 : vector<1x32xf32> to vector<8x32xf32>
    %27 = arith.addf %25, %26 : vector<8x32xf32>
    %28 = arith.truncf %27 : vector<8x32xf32> to vector<8x32xbf16>
    %c0_15 = arith.constant 0 : index
    %c0_16 = arith.constant 0 : index
    %29 = vector.load %arg5[%c0_15, %c0_16] : memref<32x1024xbf16, #tpu.memory_space<vmem>>, vector<32x1024xbf16>
    %cst_17 = arith.constant dense<0.000000e+00> : vector<8x1024xf32>
    %30 = tpu.matmul %28, %29, %cst_17 {dimension_numbers = #tpu.dot_dimension_numbers<[1], [0], [0], [1], [0, 0, 1, 1], [], []>} : vector<8x32xbf16>, vector<32x1024xbf16>, vector<8x1024xf32> -> vector<8x1024xf32>
    %c0_18 = arith.constant 0 : index
    %c0_19 = arith.constant 0 : index
    %31 = vector.load %arg6[%c0_18, %c0_19] : memref<1x1024xf32, #tpu.memory_space<vmem>>, vector<1x1024xf32>
    %32 = vector.broadcast %31 : vector<1x1024xf32> to vector<8x1024xf32>
    %33 = arith.addf %30, %32 : vector<8x1024xf32>
    %34 = vector.extract_strided_slice %33 {offsets = [0, 0], sizes = [8, 512], strides = [1, 1]} : vector<8x1024xf32> to vector<8x512xf32>
    %35 = vector.extract_strided_slice %33 {offsets = [0, 512], sizes = [8, 512], strides = [1, 1]} : vector<8x1024xf32> to vector<8x512xf32>
    %36 = arith.truncf %27 : vector<8x32xf32> to vector<8x32xbf16>
    %c0_20 = arith.constant 0 : index
    %c0_21 = arith.constant 0 : index
    %37 = vector.load %arg3[%c0_20, %c0_21] : memref<32x512xbf16, #tpu.memory_space<vmem>>, vector<32x512xbf16>
    %cst_22 = arith.constant dense<0.000000e+00> : vector<8x512xf32>
    %38 = tpu.matmul %36, %37, %cst_22 {dimension_numbers = #tpu.dot_dimension_numbers<[1], [0], [0], [1], [0, 0, 1, 1], [], []>} : vector<8x32xbf16>, vector<32x512xbf16>, vector<8x512xf32> -> vector<8x512xf32>
    %c0_23 = arith.constant 0 : index
    %c0_24 = arith.constant 0 : index
    %39 = vector.load %arg4[%c0_23, %c0_24] : memref<1x512xf32, #tpu.memory_space<vmem>>, vector<1x512xf32>
    %40 = vector.broadcast %39 : vector<1x512xf32> to vector<8x512xf32>
    %41 = arith.addf %38, %40 : vector<8x512xf32>
    %42 = vector.extract_strided_slice %41 {offsets = [0, 0], sizes = [8, 128], strides = [1, 1]} : vector<8x512xf32> to vector<8x128xf32>
    %43 = arith.truncf %42 : vector<8x128xf32> to vector<8x128xbf16>
    %44 = vector.extract_strided_slice %34 {offsets = [0, 0], sizes = [8, 128], strides = [1, 1]} : vector<8x512xf32> to vector<8x128xf32>
    %45 = arith.truncf %44 : vector<8x128xf32> to vector<8x128xbf16>
    %46 = vector.extract_strided_slice %35 {offsets = [0, 0], sizes = [8, 128], strides = [1, 1]} : vector<8x512xf32> to vector<8x128xf32>
    %47 = arith.truncf %46 : vector<8x128xf32> to vector<8x128xbf16>
    "tpu.trace_start"() <{level = 10 : i32, message = "qd,kd->qk"}> : () -> ()
    %cst_25 = arith.constant dense<0.000000e+00> : vector<8x8xf32>
    %48 = tpu.matmul %43, %45, %cst_25 {dimension_numbers = #tpu.dot_dimension_numbers<[1], [1], [0], [0], [0, 0, 1, 0], [], []>} : vector<8x128xbf16>, vector<8x128xbf16>, vector<8x8xf32> -> vector<8x8xf32>
    "tpu.trace_stop"() : () -> ()
    %cst_26 = arith.constant dense<0xFF800000> : vector<8xf32>
    %49 = vector.multi_reduction <maximumf>, %48, %cst_26 [1] : vector<8x8xf32> to vector<8xf32>
    %50 = vector.shape_cast %49 : vector<8xf32> to vector<8x1xf32>
    %51 = vector.broadcast %50 : vector<8x1xf32> to vector<8x8xf32>
    %52 = arith.subf %48, %51 : vector<8x8xf32>
    %53 = math.exp %52 : vector<8x8xf32>
    %cst_27 = arith.constant dense<0.000000e+00> : vector<8xf32>
    %54 = vector.multi_reduction <add>, %53, %cst_27 [1] : vector<8x8xf32> to vector<8xf32>
    %55 = vector.shape_cast %54 : vector<8xf32> to vector<8x1xf32>
    %56 = tpu.reciprocal %55 {approx = true} : vector<8x1xf32> -> vector<8x1xf32>
    %57 = arith.truncf %53 : vector<8x8xf32> to vector<8x8xbf16>
    %cst_28 = arith.constant dense<0.000000e+00> : vector<8x128xf32>
    %58 = tpu.matmul %57, %47, %cst_28 {dimension_numbers = #tpu.dot_dimension_numbers<[1], [0], [0], [1], [0, 0, 1, 1], [], []>} : vector<8x8xbf16>, vector<8x128xbf16>, vector<8x128xf32> -> vector<8x128xf32>
    %59 = vector.broadcast %56 : vector<8x1xf32> to vector<8x128xf32>
    %60 = arith.mulf %58, %59 : vector<8x128xf32>
    %c0_29 = arith.constant 0 : index
    %c0_30 = arith.constant 0 : index
    %61 = vector.load %arg18[%c0_29, %c0_30] : memref<8x512xf32, #tpu.memory_space<vmem>>, vector<8x128xf32>
    tpu.vector_store %arg18[%c0_29, %c0_30], %60 {strides = array<i32>} : memref<8x512xf32, #tpu.memory_space<vmem>>, vector<8x128xf32>,
    %62 = vector.extract_strided_slice %41 {offsets = [0, 128], sizes = [8, 128], strides = [1, 1]} : vector<8x512xf32> to vector<8x128xf32>
    %63 = arith.truncf %62 : vector<8x128xf32> to vector<8x128xbf16>
    %64 = vector.extract_strided_slice %34 {offsets = [0, 128], sizes = [8, 128], strides = [1, 1]} : vector<8x512xf32> to vector<8x128xf32>
    %65 = arith.truncf %64 : vector<8x128xf32> to vector<8x128xbf16>
    %66 = vector.extract_strided_slice %35 {offsets = [0, 128], sizes = [8, 128], strides = [1, 1]} : vector<8x512xf32> to vector<8x128xf32>
    %67 = arith.truncf %66 : vector<8x128xf32> to vector<8x128xbf16>
    "tpu.trace_start"() <{level = 10 : i32, message = "qd,kd->qk"}> : () -> ()
    %cst_31 = arith.constant dense<0.000000e+00> : vector<8x8xf32>
    %68 = tpu.matmul %63, %65, %cst_31 {dimension_numbers = #tpu.dot_dimension_numbers<[1], [1], [0], [0], [0, 0, 1, 0], [], []>} : vector<8x128xbf16>, vector<8x128xbf16>, vector<8x8xf32> -> vector<8x8xf32>
    "tpu.trace_stop"() : () -> ()
    %cst_32 = arith.constant dense<0xFF800000> : vector<8xf32>
    %69 = vector.multi_reduction <maximumf>, %68, %cst_32 [1] : vector<8x8xf32> to vector<8xf32>
    %70 = vector.shape_cast %69 : vector<8xf32> to vector<8x1xf32>
    %71 = vector.broadcast %70 : vector<8x1xf32> to vector<8x8xf32>
    %72 = arith.subf %68, %71 : vector<8x8xf32>
    %73 = math.exp %72 : vector<8x8xf32>
    %cst_33 = arith.constant dense<0.000000e+00> : vector<8xf32>
    %74 = vector.multi_reduction <add>, %73, %cst_33 [1] : vector<8x8xf32> to vector<8xf32>
    %75 = vector.shape_cast %74 : vector<8xf32> to vector<8x1xf32>
    %76 = tpu.reciprocal %75 {approx = true} : vector<8x1xf32> -> vector<8x1xf32>
    %77 = arith.truncf %73 : vector<8x8xf32> to vector<8x8xbf16>
    %cst_34 = arith.constant dense<0.000000e+00> : vector<8x128xf32>
    %78 = tpu.matmul %77, %67, %cst_34 {dimension_numbers = #tpu.dot_dimension_numbers<[1], [0], [0], [1], [0, 0, 1, 1], [], []>} : vector<8x8xbf16>, vector<8x128xbf16>, vector<8x128xf32> -> vector<8x128xf32>
    %79 = vector.broadcast %76 : vector<8x1xf32> to vector<8x128xf32>
    %80 = arith.mulf %78, %79 : vector<8x128xf32>
    %c0_35 = arith.constant 0 : index
    %c128 = arith.constant 128 : index
    %81 = vector.load %arg18[%c0_35, %c128] : memref<8x512xf32, #tpu.memory_space<vmem>>, vector<8x128xf32>
    tpu.vector_store %arg18[%c0_35, %c128], %80 {strides = array<i32>} : memref<8x512xf32, #tpu.memory_space<vmem>>, vector<8x128xf32>,
    %82 = vector.extract_strided_slice %41 {offsets = [0, 256], sizes = [8, 128], strides = [1, 1]} : vector<8x512xf32> to vector<8x128xf32>
    %83 = arith.truncf %82 : vector<8x128xf32> to vector<8x128xbf16>
    %84 = vector.extract_strided_slice %34 {offsets = [0, 256], sizes = [8, 128], strides = [1, 1]} : vector<8x512xf32> to vector<8x128xf32>
    %85 = arith.truncf %84 : vector<8x128xf32> to vector<8x128xbf16>
    %86 = vector.extract_strided_slice %35 {offsets = [0, 256], sizes = [8, 128], strides = [1, 1]} : vector<8x512xf32> to vector<8x128xf32>
    %87 = arith.truncf %86 : vector<8x128xf32> to vector<8x128xbf16>
    "tpu.trace_start"() <{level = 10 : i32, message = "qd,kd->qk"}> : () -> ()
    %cst_36 = arith.constant dense<0.000000e+00> : vector<8x8xf32>
    %88 = tpu.matmul %83, %85, %cst_36 {dimension_numbers = #tpu.dot_dimension_numbers<[1], [1], [0], [0], [0, 0, 1, 0], [], []>} : vector<8x128xbf16>, vector<8x128xbf16>, vector<8x8xf32> -> vector<8x8xf32>
    "tpu.trace_stop"() : () -> ()
    %cst_37 = arith.constant dense<0xFF800000> : vector<8xf32>
    %89 = vector.multi_reduction <maximumf>, %88, %cst_37 [1] : vector<8x8xf32> to vector<8xf32>
    %90 = vector.shape_cast %89 : vector<8xf32> to vector<8x1xf32>
    %91 = vector.broadcast %90 : vector<8x1xf32> to vector<8x8xf32>
    %92 = arith.subf %88, %91 : vector<8x8xf32>
    %93 = math.exp %92 : vector<8x8xf32>
    %cst_38 = arith.constant dense<0.000000e+00> : vector<8xf32>
    %94 = vector.multi_reduction <add>, %93, %cst_38 [1] : vector<8x8xf32> to vector<8xf32>
    %95 = vector.shape_cast %94 : vector<8xf32> to vector<8x1xf32>
    %96 = tpu.reciprocal %95 {approx = true} : vector<8x1xf32> -> vector<8x1xf32>
    %97 = arith.truncf %93 : vector<8x8xf32> to vector<8x8xbf16>
    %cst_39 = arith.constant dense<0.000000e+00> : vector<8x128xf32>
    %98 = tpu.matmul %97, %87, %cst_39 {dimension_numbers = #tpu.dot_dimension_numbers<[1], [0], [0], [1], [0, 0, 1, 1], [], []>} : vector<8x8xbf16>, vector<8x128xbf16>, vector<8x128xf32> -> vector<8x128xf32>
    %99 = vector.broadcast %96 : vector<8x1xf32> to vector<8x128xf32>
    %100 = arith.mulf %98, %99 : vector<8x128xf32>
    %c0_40 = arith.constant 0 : index
    %c256 = arith.constant 256 : index
    %101 = vector.load %arg18[%c0_40, %c256] : memref<8x512xf32, #tpu.memory_space<vmem>>, vector<8x128xf32>
    tpu.vector_store %arg18[%c0_40, %c256], %100 {strides = array<i32>} : memref<8x512xf32, #tpu.memory_space<vmem>>, vector<8x128xf32>,
    %102 = vector.extract_strided_slice %41 {offsets = [0, 384], sizes = [8, 128], strides = [1, 1]} : vector<8x512xf32> to vector<8x128xf32>
    %103 = arith.truncf %102 : vector<8x128xf32> to vector<8x128xbf16>
    %104 = vector.extract_strided_slice %34 {offsets = [0, 384], sizes = [8, 128], strides = [1, 1]} : vector<8x512xf32> to vector<8x128xf32>
    %105 = arith.truncf %104 : vector<8x128xf32> to vector<8x128xbf16>
    %106 = vector.extract_strided_slice %35 {offsets = [0, 384], sizes = [8, 128], strides = [1, 1]} : vector<8x512xf32> to vector<8x128xf32>
    %107 = arith.truncf %106 : vector<8x128xf32> to vector<8x128xbf16>
    "tpu.trace_start"() <{level = 10 : i32, message = "qd,kd->qk"}> : () -> ()
    %cst_41 = arith.constant dense<0.000000e+00> : vector<8x8xf32>
    %108 = tpu.matmul %103, %105, %cst_41 {dimension_numbers = #tpu.dot_dimension_numbers<[1], [1], [0], [0], [0, 0, 1, 0], [], []>} : vector<8x128xbf16>, vector<8x128xbf16>, vector<8x8xf32> -> vector<8x8xf32>
    "tpu.trace_stop"() : () -> ()
    %cst_42 = arith.constant dense<0xFF800000> : vector<8xf32>
    %109 = vector.multi_reduction <maximumf>, %108, %cst_42 [1] : vector<8x8xf32> to vector<8xf32>
    %110 = vector.shape_cast %109 : vector<8xf32> to vector<8x1xf32>
    %111 = vector.broadcast %110 : vector<8x1xf32> to vector<8x8xf32>
    %112 = arith.subf %108, %111 : vector<8x8xf32>
    %113 = math.exp %112 : vector<8x8xf32>
    %cst_43 = arith.constant dense<0.000000e+00> : vector<8xf32>
    %114 = vector.multi_reduction <add>, %113, %cst_43 [1] : vector<8x8xf32> to vector<8xf32>
    %115 = vector.shape_cast %114 : vector<8xf32> to vector<8x1xf32>
    %116 = tpu.reciprocal %115 {approx = true} : vector<8x1xf32> -> vector<8x1xf32>
    %117 = arith.truncf %113 : vector<8x8xf32> to vector<8x8xbf16>
    %cst_44 = arith.constant dense<0.000000e+00> : vector<8x128xf32>
    %118 = tpu.matmul %117, %107, %cst_44 {dimension_numbers = #tpu.dot_dimension_numbers<[1], [0], [0], [1], [0, 0, 1, 1], [], []>} : vector<8x8xbf16>, vector<8x128xbf16>, vector<8x128xf32> -> vector<8x128xf32>
    %119 = vector.broadcast %116 : vector<8x1xf32> to vector<8x128xf32>
    %120 = arith.mulf %118, %119 : vector<8x128xf32>
    %c0_45 = arith.constant 0 : index
    %c384 = arith.constant 384 : index
    %121 = vector.load %arg18[%c0_45, %c384] : memref<8x512xf32, #tpu.memory_space<vmem>>, vector<8x128xf32>
    tpu.vector_store %arg18[%c0_45, %c384], %120 {strides = array<i32>} : memref<8x512xf32, #tpu.memory_space<vmem>>, vector<8x128xf32>,
    %c0_46 = arith.constant 0 : index
    %c0_47 = arith.constant 0 : index
    %122 = vector.load %arg18[%c0_46, %c0_47] : memref<8x512xf32, #tpu.memory_space<vmem>>, vector<8x512xf32>
    %123 = arith.truncf %122 : vector<8x512xf32> to vector<8x512xbf16>
    %c0_48 = arith.constant 0 : index
    %c0_49 = arith.constant 0 : index
    %124 = vector.load %arg7[%c0_48, %c0_49] : memref<512x32xbf16, #tpu.memory_space<vmem>>, vector<512x32xbf16>
    %cst_50 = arith.constant dense<0.000000e+00> : vector<8x32xf32>
    %125 = tpu.matmul %123, %124, %cst_50 {dimension_numbers = #tpu.dot_dimension_numbers<[1], [0], [0], [1], [0, 0, 1, 1], [], []>} : vector<8x512xbf16>, vector<512x32xbf16>, vector<8x32xf32> -> vector<8x32xf32>
    %126 = arith.addf %1, %125 : vector<8x32xf32>
    %c0_51 = arith.constant 0 : index
    %c0_52 = arith.constant 0 : index
    %127 = vector.load %arg8[%c0_51, %c0_52] : memref<1x32xf32, #tpu.memory_space<vmem>>, vector<1x32xf32>
    %128 = vector.broadcast %127 : vector<1x32xf32> to vector<8x32xf32>
    %129 = arith.addf %126, %128 : vector<8x32xf32>
    %cst_53 = arith.constant dense<0.000000e+00> : vector<8xf32>
    %130 = vector.multi_reduction <add>, %129, %cst_53 [1] : vector<8x32xf32> to vector<8xf32>
    %131 = vector.shape_cast %130 : vector<8xf32> to vector<8x1xf32>
    %cst_54 = arith.constant 3.200000e+01 : f32
    %132 = vector.broadcast %cst_54 : f32 to vector<8x1xf32>
    %133 = arith.divf %131, %132 : vector<8x1xf32>
    %134 = vector.broadcast %133 : vector<8x1xf32> to vector<8x32xf32>
    %135 = arith.subf %129, %134 : vector<8x32xf32>
    %136 = arith.mulf %135, %135 : vector<8x32xf32>
    %cst_55 = arith.constant dense<0.000000e+00> : vector<8xf32>
    %137 = vector.multi_reduction <add>, %136, %cst_55 [1] : vector<8x32xf32> to vector<8xf32>
    %138 = vector.shape_cast %137 : vector<8xf32> to vector<8x1xf32>
    %cst_56 = arith.constant 0.0322580636 : f32
    %139 = vector.broadcast %cst_56 : f32 to vector<8x1xf32>
    %140 = arith.mulf %138, %139 : vector<8x1xf32>
    %141 = math.sqrt %140 : vector<8x1xf32>
    %cst_57 = arith.constant 9.99999997E-7 : f32
    %142 = vector.broadcast %cst_57 : f32 to vector<8x1xf32>
    %143 = arith.addf %141, %142 : vector<8x1xf32>
    %cst_58 = arith.constant 1.000000e+00 : f32
    %144 = vector.broadcast %cst_58 : f32 to vector<8x1xf32>
    %145 = arith.divf %144, %143 : vector<8x1xf32>
    %146 = vector.broadcast %4 : vector<1x32xf32> to vector<8x32xf32>
    %147 = vector.broadcast %145 : vector<8x1xf32> to vector<8x32xf32>
    %148 = arith.mulf %146, %147 : vector<8x32xf32>
    %149 = arith.mulf %135, %148 : vector<8x32xf32>
    %150 = vector.broadcast %5 : vector<1x32xf32> to vector<8x32xf32>
    %151 = arith.addf %149, %150 : vector<8x32xf32>
    %152 = arith.truncf %151 : vector<8x32xf32> to vector<8x32xbf16>
    %cst_59 = arith.constant 0.000000e+00 : f32
    %153 = vector.broadcast %cst_59 : f32 to vector<8x32xf32>
    %c0_60 = arith.constant 0 : index
    %c0_61 = arith.constant 0 : index
    %154 = vector.load %arg9[%c0_60, %c0_61] : memref<32x64xbf16, #tpu.memory_space<vmem>>, vector<32x64xbf16>
    %cst_62 = arith.constant dense<0.000000e+00> : vector<8x64xf32>
    %155 = tpu.matmul %152, %154, %cst_62 {dimension_numbers = #tpu.dot_dimension_numbers<[1], [0], [0], [1], [0, 0, 1, 1], [], []>} : vector<8x32xbf16>, vector<32x64xbf16>, vector<8x64xf32> -> vector<8x64xf32>
    %c0_63 = arith.constant 0 : index
    %c0_64 = arith.constant 0 : index
    %156 = vector.load %arg10[%c0_63, %c0_64] : memref<1x64xf32, #tpu.memory_space<vmem>>, vector<1x64xf32>
    %157 = vector.broadcast %156 : vector<1x64xf32> to vector<8x64xf32>
    %158 = arith.addf %155, %157 : vector<8x64xf32>
    %cst_65 = arith.constant 0.000000e+00 : f32
    %159 = vector.broadcast %cst_65 : f32 to vector<8x64xf32>
    %160 = arith.maximumf %158, %159 : vector<8x64xf32>
    %161 = arith.truncf %160 : vector<8x64xf32> to vector<8x64xbf16>
    %c0_66 = arith.constant 0 : index
    %c0_67 = arith.constant 0 : index
    %162 = vector.load %arg11[%c0_66, %c0_67] : memref<64x32xbf16, #tpu.memory_space<vmem>>, vector<64x32xbf16>
    %cst_68 = arith.constant dense<0.000000e+00> : vector<8x32xf32>
    %163 = tpu.matmul %161, %162, %cst_68 {dimension_numbers = #tpu.dot_dimension_numbers<[1], [0], [0], [1], [0, 0, 1, 1], [], []>} : vector<8x64xbf16>, vector<64x32xbf16>, vector<8x32xf32> -> vector<8x32xf32>
    %164 = arith.addf %153, %163 : vector<8x32xf32>
    %165 = arith.addf %129, %164 : vector<8x32xf32>
    %c0_69 = arith.constant 0 : index
    %c0_70 = arith.constant 0 : index
    %166 = vector.load %arg12[%c0_69, %c0_70] : memref<1x32xf32, #tpu.memory_space<vmem>>, vector<1x32xf32>
    %167 = vector.broadcast %166 : vector<1x32xf32> to vector<8x32xf32>
    %168 = arith.addf %165, %167 : vector<8x32xf32>
    %c0_71 = arith.constant 0 : index
    %c0_72 = arith.constant 0 : index
    %c0_73 = arith.constant 0 : index
    %169 = vector.load %arg17[%c0_71, %c0_72, %c0_73] : memref<1x8x32xf32, #tpu.memory_space<vmem>>, vector<1x8x32xf32>
    %170 = vector.shape_cast %169 : vector<1x8x32xf32> to vector<8x32xf32>
    %171 = vector.shape_cast %168 : vector<8x32xf32> to vector<1x8x32xf32>
    tpu.vector_store %arg17[%c0_71, %c0_72, %c0_73], %171 {strides = array<i32>} : memref<1x8x32xf32, #tpu.memory_space<vmem>>, vector<1x8x32xf32>,
    return
  }
  func.func @transform_0(%arg0: i32, %arg1: i32) -> (i32, i32, i32) {
    %c0_i32 = arith.constant 0 : i32
    %c0_i32_0 = arith.constant 0 : i32
    %c0_i32_1 = arith.constant 0 : i32
    return %arg0, %c0_i32, %c0_i32_0 : i32, i32, i32
  }
  func.func @transform_1(%arg0: i32, %arg1: i32) -> (i32, i32) {
    %c0_i32 = arith.constant 0 : i32
    %c0_i32_0 = arith.constant 0 : i32
    %c0_i32_1 = arith.constant 0 : i32
    return %c0_i32, %c0_i32_0 : i32, i32
  }
  func.func @transform_2(%arg0: i32, %arg1: i32) -> (i32, i32) {
    %c0_i32 = arith.constant 0 : i32
    %c0_i32_0 = arith.constant 0 : i32
    %c0_i32_1 = arith.constant 0 : i32
    return %c0_i32, %c0_i32_0 : i32, i32
  }
  func.func @transform_3(%arg0: i32, %arg1: i32) -> (i32, i32) {
    %c0_i32 = arith.constant 0 : i32
    %c0_i32_0 = arith.constant 0 : i32
    %c0_i32_1 = arith.constant 0 : i32
    return %c0_i32, %c0_i32_0 : i32, i32
  }
  func.func @transform_4(%arg0: i32, %arg1: i32) -> (i32, i32) {
    %c0_i32 = arith.constant 0 : i32
    %c0_i32_0 = arith.constant 0 : i32
    %c0_i32_1 = arith.constant 0 : i32
    return %c0_i32, %c0_i32_0 : i32, i32
  }
  func.func @transform_5(%arg0: i32, %arg1: i32) -> (i32, i32) {
    %c0_i32 = arith.constant 0 : i32
    %c0_i32_0 = arith.constant 0 : i32
    %c0_i32_1 = arith.constant 0 : i32
    return %c0_i32, %c0_i32_0 : i32, i32
  }
  func.func @transform_6(%arg0: i32, %arg1: i32) -> (i32, i32) {
    %c0_i32 = arith.constant 0 : i32
    %c0_i32_0 = arith.constant 0 : i32
    %c0_i32_1 = arith.constant 0 : i32
    return %c0_i32, %c0_i32_0 : i32, i32
  }
  func.func @transform_7(%arg0: i32, %arg1: i32) -> (i32, i32) {
    %c0_i32 = arith.constant 0 : i32
    %c0_i32_0 = arith.constant 0 : i32
    %c0_i32_1 = arith.constant 0 : i32
    return %c0_i32, %c0_i32_0 : i32, i32
  }
  func.func @transform_8(%arg0: i32, %arg1: i32) -> (i32, i32) {
    %c0_i32 = arith.constant 0 : i32
    %c0_i32_0 = arith.constant 0 : i32
    %c0_i32_1 = arith.constant 0 : i32
    return %c0_i32, %c0_i32_0 : i32, i32
  }
  func.func @transform_9(%arg0: i32, %arg1: i32) -> (i32, i32) {
    %c0_i32 = arith.constant 0 : i32
    %c0_i32_0 = arith.constant 0 : i32
    %c0_i32_1 = arith.constant 0 : i32
    return %c0_i32, %c0_i32_0 : i32, i32
  }
  func.func @transform_10(%arg0: i32, %arg1: i32) -> (i32, i32) {
    %c0_i32 = arith.constant 0 : i32
    %c0_i32_0 = arith.constant 0 : i32
    %c0_i32_1 = arith.constant 0 : i32
    return %c0_i32, %c0_i32_0 : i32, i32
  }
  func.func @transform_11(%arg0: i32, %arg1: i32) -> (i32, i32) {
    %c0_i32 = arith.constant 0 : i32
    %c0_i32_0 = arith.constant 0 : i32
    %c0_i32_1 = arith.constant 0 : i32
    return %c0_i32, %c0_i32_0 : i32, i32
  }
  func.func @transform_12(%arg0: i32, %arg1: i32) -> (i32, i32) {
    %c0_i32 = arith.constant 0 : i32
    %c0_i32_0 = arith.constant 0 : i32
    %c0_i32_1 = arith.constant 0 : i32
    return %c0_i32, %c0_i32_0 : i32, i32
  }
  func.func @transform_13(%arg0: i32, %arg1: i32) -> (i32, i32) {
    %c0_i32 = arith.constant 0 : i32
    %c0_i32_0 = arith.constant 0 : i32
    %c0_i32_1 = arith.constant 0 : i32
    return %c0_i32, %c0_i32_0 : i32, i32
  }
  func.func @transform_14(%arg0: i32, %arg1: i32) -> (i32, i32) {
    %c0_i32 = arith.constant 0 : i32
    %c0_i32_0 = arith.constant 0 : i32
    %c0_i32_1 = arith.constant 0 : i32
    return %c0_i32, %c0_i32_0 : i32, i32
  }
  func.func @transform_15(%arg0: i32, %arg1: i32) -> (i32, i32, i32) {
    %c0_i32 = arith.constant 0 : i32
    %c0_i32_0 = arith.constant 0 : i32
    return %arg0, %arg1, %c0_i32 : i32, i32, i32
  }
}

</mosaic_0001>

<llo_original>
// kernel: tpu_custom_call.1
$region0: #{tpu_custom_call.1}
  #allocation0 [shape = 'u32[]', space=smem, size = 0x4, offset = 0x4, fixed_abs, tag = 'smem constant byte address 0x4 - core index']
  #allocation1 [shape = 'u32[144,128]{1,0:T(1,128)}', space=vmem, size = 0x12000, scoped, tag = 'internal scratch']
  %s0 = inlined_call_operand.hbm [shape: f32[8,128], index: 0, kind: input, shape index: {}]
  %s1 = inlined_call_operand.hbm [shape: f32[8,128], index: 1, kind: output, shape index: {}]
  %s2 = sld [smem:[#allocation0]]
  $region18: #{tpu_custom_call.1} parent=0
    _
  %s4 = ssub.s32 1, %s2
  %s5 = scalar_select 0, %s4, %s2
  $region1: #{tpu_custom_call.1} parent=0
    #allocation2 [shape = 'u8[4096]{0}', space=vmem, size = 0x1000, scoped, tag = 'input window, operand 0, single buffered']
    #allocation3 [shape = 's32[1]{0}', space=sflag, size = 0x4, scoped, tag = 'scoped memory for tpu_custom_call.1']
    #allocation4 [shape = 's32[1]{0}', space=sflag, size = 0x4, scoped, tag = 'scoped memory for tpu_custom_call.1']
    #allocation5 [shape = 'u8[4096]{0}', space=vmem, size = 0x1000, scoped, tag = 'output window, operand 0, single buffered']
    %6 = vsyncpa [#allocation3], 0
    %7 = vsyncpa [#allocation4], 0
    // Predicated region
    $region2: #{tpu_custom_call.1} parent=1 // pred_check
      _
    $region3: #{tpu_custom_call.1} parent=1 // pred_check_branch
      %9 = sbr.rel (0) target = $region5
    $region4: #{tpu_custom_call.1} parent=1 // pred_region
      %s11 = ssub.s32 128, 128
      %12 = vsyncadd [#allocation3], %s11
      %s14 = sshll.u32 [#allocation2], 4
      %s15 = int_to_ptr.vmem [resolvable:$true] %s14
      %17 = dma.hbm_to_vmem [thread:$0]  %s0, 128, %s15, [#allocation3]
    $region5: #{tpu_custom_call.1} parent=1 // pred_fallthru
      _
    // Predicated region
    $region6: #{tpu_custom_call.1} parent=1 // pred_check
      _
    $region7: #{tpu_custom_call.1} parent=1 // pred_check_branch
      %19 = sbr.rel (0) target = $region9
    $region8: #{tpu_custom_call.1} parent=1 // pred_region
      %20 = dma.done [#allocation3], 128
    $region9: #{tpu_custom_call.1} parent=1 // pred_fallthru
      _
    %v21 = vld [vmem:[#allocation2] sm:$0xff]
    %v22 = vmul.f32 %v21, 2.0
    %23 = vst [vmem:[#allocation5] sm:$0xff] %v22
    // Predicated region
    $region10: #{tpu_custom_call.1} parent=1 // pred_check
      _
    $region11: #{tpu_custom_call.1} parent=1 // pred_check_branch
      %25 = sbr.rel (0) target = $region13
    $region12: #{tpu_custom_call.1} parent=1 // pred_region
      %s27 = ssub.s32 128, 128
      %28 = vsyncadd [#allocation4], %s27
      %s30 = sshll.u32 [#allocation5], 4
      %s31 = int_to_ptr.vmem [resolvable:$true] %s30
      %33 = dma.vmem_to_hbm [thread:$0]  %s31, 128, %s1, [#allocation4]
    $region13: #{tpu_custom_call.1} parent=1 // pred_fallthru
      _
    // Predicated region
    $region14: #{tpu_custom_call.1} parent=1 // pred_check
      _
    $region15: #{tpu_custom_call.1} parent=1 // pred_check_branch
      %35 = sbr.rel (0) target = $region17
    $region16: #{tpu_custom_call.1} parent=1 // pred_region
      %36 = dma.done [#allocation4], 128
    $region17: #{tpu_custom_call.1} parent=1 // pred_fallthru
      _
    %37 = vsyncpa [#allocation3], 1
    %38 = vsyncpa [#allocation4], 1

// kernel: tpu_custom_call.1
$region0: #{tpu_custom_call.1}
  #allocation0 [shape = 'u32[]', space=smem, size = 0x4, offset = 0x4, fixed_abs, tag = 'smem constant byte address 0x4 - core index']
  #allocation1 [shape = 'u32[144,128]{1,0:T(1,128)}', space=vmem, size = 0x12000, scoped, tag = 'internal scratch']
  #allocation2 [shape = 'f32[8,512]{1,0:T(8,128)}', space=vmem, size = 0x4000, scoped, tag = 'scratch operand']
  %s0 = inlined_call_operand.vmem [shape: f32[2,8,32], index: 0, kind: input, shape index: {}]
  %s1 = inlined_call_operand.vmem [shape: bf16[32,512], index: 1, kind: input, shape index: {}]
  %s2 = inlined_call_operand.vmem [shape: f32[1,512], index: 2, kind: input, shape index: {}]
  %s3 = inlined_call_operand.vmem [shape: bf16[32,1024], index: 3, kind: input, shape index: {}]
  %s4 = inlined_call_operand.vmem [shape: f32[1,1024], index: 4, kind: input, shape index: {}]
  %s5 = inlined_call_operand.vmem [shape: bf16[512,32], index: 5, kind: input, shape index: {}]
  %s6 = inlined_call_operand.vmem [shape: f32[1,32], index: 6, kind: input, shape index: {}]
  %s7 = inlined_call_operand.vmem [shape: bf16[32,64], index: 7, kind: input, shape index: {}]
  %s8 = inlined_call_operand.vmem [shape: f32[1,64], index: 8, kind: input, shape index: {}]
  %s9 = inlined_call_operand.vmem [shape: bf16[64,32], index: 9, kind: input, shape index: {}]
  %s10 = inlined_call_operand.vmem [shape: f32[1,32], index: 10, kind: input, shape index: {}]
  %s11 = inlined_call_operand.vmem [shape: f32[1,32], index: 11, kind: input, shape index: {}]
  %s12 = inlined_call_operand.vmem [shape: f32[1,32], index: 12, kind: input, shape index: {}]
  %s13 = inlined_call_operand.vmem [shape: f32[1,32], index: 13, kind: input, shape index: {}]
  %s14 = inlined_call_operand.vmem [shape: f32[1,32], index: 14, kind: input, shape index: {}]
  %s15 = inlined_call_operand.hbm [shape: f32[2,8,32], index: 15, kind: output, shape index: {}]
  %s16 = sld [smem:[#allocation0]]
  $region93: #{tpu_custom_call.1} parent=0
    _
  %s18 = ssub.s32 1, %s16
  %s19 = scalar_select 0, %s18, %s16
  $region1: #{tpu_custom_call.1} parent=0
    #allocation3 [shape = 'u8[8192]{0}', space=vmem, size = 0x2000, scoped, tag = 'output window, operand 0']
    #allocation4 [shape = 's32[2]{0}', space=sflag, size = 0x8, scoped, tag = 'scoped memory for tpu_custom_call.1']
    %20 = vsyncpa [#allocation4], 0
    %s21 = scalar_lea.sflag [#allocation4], 1
    %22 = vsyncpa %s21, 0
    loop: start=0, step=1, limit=4
    $region2: #{tpu_custom_call.1} parent=1 // loop_pre_header
      _
    $region3: #{tpu_custom_call.1} parent=1 // loop_header
      %s24 = sphi 0, %s28
      %p25 = scmp.ge.s32.totalorder %s24, 4
      %s31 = sphi 0, %s43
      %s32 = sphi 0, %s39
      %s33 = sphi 0, %s31
      %s34 = sphi 0, %s32
      %s35 = sphi 0, %s33
      %s36 = sphi 0, %s34
      %s46 = sphi 0, %s48
      %s49 = sphi 0, %s46
      %s50 = sphi 0, %s49
      %s66 = sphi 0, %s50
      %s70 = sphi 0, %s70
      %s72 = sphi 0, %s70
      %s73 = sphi 0, %s72
      %s87 = sphi 0, %s73
      %s91 = sphi 0, %s91
      %s93 = sphi 0, %s91
      %s94 = sphi 0, %s93
      %s108 = sphi 0, %s94
      %s112 = sphi 0, %s112
      %s114 = sphi 0, %s112
      %s115 = sphi 0, %s114
      %s129 = sphi 0, %s115
      %s133 = sphi 0, %s133
      %s135 = sphi 0, %s133
      %s136 = sphi 0, %s135
      %s150 = sphi 0, %s136
      %s154 = sphi 0, %s154
      %s156 = sphi 0, %s154
      %s157 = sphi 0, %s156
      %s171 = sphi 0, %s157
      %s175 = sphi 0, %s175
      %s177 = sphi 0, %s175
      %s178 = sphi 0, %s177
      %s192 = sphi 0, %s178
      %s196 = sphi 0, %s196
      %s198 = sphi 0, %s196
      %s199 = sphi 0, %s198
      %s213 = sphi 0, %s199
      %s217 = sphi 0, %s217
      %s219 = sphi 0, %s217
      %s220 = sphi 0, %s219
      %s234 = sphi 0, %s220
      %s238 = sphi 0, %s238
      %s240 = sphi 0, %s238
      %s241 = sphi 0, %s240
      %s255 = sphi 0, %s241
      %s259 = sphi 0, %s259
      %s261 = sphi 0, %s259
      %s262 = sphi 0, %s261
      %s276 = sphi 0, %s262
      %s280 = sphi 0, %s280
      %s282 = sphi 0, %s280
      %s283 = sphi 0, %s282
      %s297 = sphi 0, %s283
      %s301 = sphi 0, %s301
      %s303 = sphi 0, %s301
      %s304 = sphi 0, %s303
      %s318 = sphi 0, %s304
      %s322 = sphi 0, %s322
      %s324 = sphi 0, %s322
      %s325 = sphi 0, %s324
      %s339 = sphi 0, %s325
      %s343 = sphi 0, %s343
      %s345 = sphi 0, %s343
      %s346 = sphi 0, %s345
      %s360 = sphi 0, %s346
      %s368 = sphi 0, %s370
      %s371 = sphi 0, %s368
      %s372 = sphi 0, %s371
      %s388 = sphi 0, %s372
    $region4: #{tpu_custom_call.1} parent=1 // loop_header_branch
      %27 = sbr.rel (%p25) target = $region8
    $region5: #{tpu_custom_call.1} parent=1 // loop_body
      %s29 = ssub.s32 %s24, 1
      %s30 = ssub.s32 %s24, 2
      %s37 = sadd.s32 1, %s32
      %p38 = scmp.ge.s32.totalorder %s37, 1
      %s39 = scalar_select %p38, 0, %s37
      %s40 = sadd.s32 1, %s31
      %s41 = scalar_select %p38, %s40, %s31
      %p42 = scmp.ge.s32.totalorder %s41, 2
      %s43 = scalar_select %p42, 0, %s41
      %s44 = ssub.s32 %s31, %s43
      %p45 = scmp.eq.s32.totalorder %s44, 0
      %s47 = sadd.s32 %s46, 1
      %s48 = scalar_select %p45, %s46, %s47
      %p51 = pneg %p45
      %p52 = scmp.eq.s32.totalorder %s24, 1
      %p53 = por %p51, %p52
      %p54 = scmp.ne.s32.totalorder %s46, %s49
      %p55 = scmp.eq.s32.totalorder %s24, 0
      %p56 = por %p54, %p55
      %p57 = scmp.ne.s32.totalorder %s46, %s49
      %p58 = scmp.eq.s32.totalorder %s29, 1
      %p59 = por %p57, %p58
      %p60 = scmp.ne.s32.totalorder %s49, %s50
      %p61 = scmp.eq.s32.totalorder %s29, 0
      %p62 = por %p60, %p61
      %p63 = scmp.ne.s32.totalorder %s49, %s50
      %p64 = scmp.eq.s32.totalorder %s30, 1
      %p65 = por %p63, %p64
      %p67 = scmp.ne.s32.totalorder %s50, %s66
      %p68 = scmp.eq.s32.totalorder %s30, 0
      %p69 = por %p67, %p68
      %s71 = sadd.s32 %s70, 1
      %p74 = scmp.eq.s32.totalorder %s24, 1
      %p75 = scmp.ne.s32.totalorder %s70, %s72
      %p76 = scmp.eq.s32.totalorder %s24, 0
      %p77 = por %p75, %p76
      %p78 = scmp.ne.s32.totalorder %s70, %s72
      %p79 = scmp.eq.s32.totalorder %s29, 1
      %p80 = por %p78, %p79
      %p81 = scmp.ne.s32.totalorder %s72, %s73
      %p82 = scmp.eq.s32.totalorder %s29, 0
      %p83 = por %p81, %p82
      %p84 = scmp.ne.s32.totalorder %s72, %s73
      %p85 = scmp.eq.s32.totalorder %s30, 1
      %p86 = por %p84, %p85
      %p88 = scmp.ne.s32.totalorder %s73, %s87
      %p89 = scmp.eq.s32.totalorder %s30, 0
      %p90 = por %p88, %p89
      %s92 = sadd.s32 %s91, 1
      %p95 = scmp.eq.s32.totalorder %s24, 1
      %p96 = scmp.ne.s32.totalorder %s91, %s93
      %p97 = scmp.eq.s32.totalorder %s24, 0
      %p98 = por %p96, %p97
      %p99 = scmp.ne.s32.totalorder %s91, %s93
      %p100 = scmp.eq.s32.totalorder %s29, 1
      %p101 = por %p99, %p100
      %p102 = scmp.ne.s32.totalorder %s93, %s94
      %p103 = scmp.eq.s32.totalorder %s29, 0
      %p104 = por %p102, %p103
      %p105 = scmp.ne.s32.totalorder %s93, %s94
      %p106 = scmp.eq.s32.totalorder %s30, 1
      %p107 = por %p105, %p106
      %p109 = scmp.ne.s32.totalorder %s94, %s108
      %p110 = scmp.eq.s32.totalorder %s30, 0
      %p111 = por %p109, %p110
      %s113 = sadd.s32 %s112, 1
      %p116 = scmp.eq.s32.totalorder %s24, 1
      %p117 = scmp.ne.s32.totalorder %s112, %s114
      %p118 = scmp.eq.s32.totalorder %s24, 0
      %p119 = por %p117, %p118
      %p120 = scmp.ne.s32.totalorder %s112, %s114
      %p121 = scmp.eq.s32.totalorder %s29, 1
      %p122 = por %p120, %p121
      %p123 = scmp.ne.s32.totalorder %s114, %s115
      %p124 = scmp.eq.s32.totalorder %s29, 0
      %p125 = por %p123, %p124
      %p126 = scmp.ne.s32.totalorder %s114, %s115
      %p127 = scmp.eq.s32.totalorder %s30, 1
      %p128 = por %p126, %p127
      %p130 = scmp.ne.s32.totalorder %s115, %s129
      %p131 = scmp.eq.s32.totalorder %s30, 0
      %p132 = por %p130, %p131
      %s134 = sadd.s32 %s133, 1
      %p137 = scmp.eq.s32.totalorder %s24, 1
      %p138 = scmp.ne.s32.totalorder %s133, %s135
      %p139 = scmp.eq.s32.totalorder %s24, 0
      %p140 = por %p138, %p139
      %p141 = scmp.ne.s32.totalorder %s133, %s135
      %p142 = scmp.eq.s32.totalorder %s29, 1
      %p143 = por %p141, %p142
      %p144 = scmp.ne.s32.totalorder %s135, %s136
      %p145 = scmp.eq.s32.totalorder %s29, 0
      %p146 = por %p144, %p145
      %p147 = scmp.ne.s32.totalorder %s135, %s136
      %p148 = scmp.eq.s32.totalorder %s30, 1
      %p149 = por %p147, %p148
      %p151 = scmp.ne.s32.totalorder %s136, %s150
      %p152 = scmp.eq.s32.totalorder %s30, 0
      %p153 = por %p151, %p152
      %s155 = sadd.s32 %s154, 1
      %p158 = scmp.eq.s32.totalorder %s24, 1
      %p159 = scmp.ne.s32.totalorder %s154, %s156
      %p160 = scmp.eq.s32.totalorder %s24, 0
      %p161 = por %p159, %p160
      %p162 = scmp.ne.s32.totalorder %s154, %s156
      %p163 = scmp.eq.s32.totalorder %s29, 1
      %p164 = por %p162, %p163
      %p165 = scmp.ne.s32.totalorder %s156, %s157
      %p166 = scmp.eq.s32.totalorder %s29, 0
      %p167 = por %p165, %p166
      %p168 = scmp.ne.s32.totalorder %s156, %s157
      %p169 = scmp.eq.s32.totalorder %s30, 1
      %p170 = por %p168, %p169
      %p172 = scmp.ne.s32.totalorder %s157, %s171
      %p173 = scmp.eq.s32.totalorder %s30, 0
      %p174 = por %p172, %p173
      %s176 = sadd.s32 %s175, 1
      %p179 = scmp.eq.s32.totalorder %s24, 1
      %p180 = scmp.ne.s32.totalorder %s175, %s177
      %p181 = scmp.eq.s32.totalorder %s24, 0
      %p182 = por %p180, %p181
      %p183 = scmp.ne.s32.totalorder %s175, %s177
      %p184 = scmp.eq.s32.totalorder %s29, 1
      %p185 = por %p183, %p184
      %p186 = scmp.ne.s32.totalorder %s177, %s178
      %p187 = scmp.eq.s32.totalorder %s29, 0
      %p188 = por %p186, %p187
      %p189 = scmp.ne.s32.totalorder %s177, %s178
      %p190 = scmp.eq.s32.totalorder %s30, 1
      %p191 = por %p189, %p190
      %p193 = scmp.ne.s32.totalorder %s178, %s192
      %p194 = scmp.eq.s32.totalorder %s30, 0
      %p195 = por %p193, %p194
      %s197 = sadd.s32 %s196, 1
      %p200 = scmp.eq.s32.totalorder %s24, 1
      %p201 = scmp.ne.s32.totalorder %s196, %s198
      %p202 = scmp.eq.s32.totalorder %s24, 0
      %p203 = por %p201, %p202
      %p204 = scmp.ne.s32.totalorder %s196, %s198
      %p205 = scmp.eq.s32.totalorder %s29, 1
      %p206 = por %p204, %p205
      %p207 = scmp.ne.s32.totalorder %s198, %s199
      %p208 = scmp.eq.s32.totalorder %s29, 0
      %p209 = por %p207, %p208
      %p210 = scmp.ne.s32.totalorder %s198, %s199
      %p211 = scmp.eq.s32.totalorder %s30, 1
      %p212 = por %p210, %p211
      %p214 = scmp.ne.s32.totalorder %s199, %s213
      %p215 = scmp.eq.s32.totalorder %s30, 0
      %p216 = por %p214, %p215
      %s218 = sadd.s32 %s217, 1
      %p221 = scmp.eq.s32.totalorder %s24, 1
      %p222 = scmp.ne.s32.totalorder %s217, %s219
      %p223 = scmp.eq.s32.totalorder %s24, 0
      %p224 = por %p222, %p223
      %p225 = scmp.ne.s32.totalorder %s217, %s219
      %p226 = scmp.eq.s32.totalorder %s29, 1
      %p227 = por %p225, %p226
      %p228 = scmp.ne.s32.totalorder %s219, %s220
      %p229 = scmp.eq.s32.totalorder %s29, 0
      %p230 = por %p228, %p229
      %p231 = scmp.ne.s32.totalorder %s219, %s220
      %p232 = scmp.eq.s32.totalorder %s30, 1
      %p233 = por %p231, %p232
      %p235 = scmp.ne.s32.totalorder %s220, %s234
      %p236 = scmp.eq.s32.totalorder %s30, 0
      %p237 = por %p235, %p236
      %s239 = sadd.s32 %s238, 1
      %p242 = scmp.eq.s32.totalorder %s24, 1
      %p243 = scmp.ne.s32.totalorder %s238, %s240
      %p244 = scmp.eq.s32.totalorder %s24, 0
      %p245 = por %p243, %p244
      %p246 = scmp.ne.s32.totalorder %s238, %s240
      %p247 = scmp.eq.s32.totalorder %s29, 1
      %p248 = por %p246, %p247
      %p249 = scmp.ne.s32.totalorder %s240, %s241
      %p250 = scmp.eq.s32.totalorder %s29, 0
      %p251 = por %p249, %p250
      %p252 = scmp.ne.s32.totalorder %s240, %s241
      %p253 = scmp.eq.s32.totalorder %s30, 1
      %p254 = por %p252, %p253
      %p256 = scmp.ne.s32.totalorder %s241, %s255
      %p257 = scmp.eq.s32.totalorder %s30, 0
      %p258 = por %p256, %p257
      %s260 = sadd.s32 %s259, 1
      %p263 = scmp.eq.s32.totalorder %s24, 1
      %p264 = scmp.ne.s32.totalorder %s259, %s261
      %p265 = scmp.eq.s32.totalorder %s24, 0
      %p266 = por %p264, %p265
      %p267 = scmp.ne.s32.totalorder %s259, %s261
      %p268 = scmp.eq.s32.totalorder %s29, 1
      %p269 = por %p267, %p268
      %p270 = scmp.ne.s32.totalorder %s261, %s262
      %p271 = scmp.eq.s32.totalorder %s29, 0
      %p272 = por %p270, %p271
      %p273 = scmp.ne.s32.totalorder %s261, %s262
      %p274 = scmp.eq.s32.totalorder %s30, 1
      %p275 = por %p273, %p274
      %p277 = scmp.ne.s32.totalorder %s262, %s276
      %p278 = scmp.eq.s32.totalorder %s30, 0
      %p279 = por %p277, %p278
      %s281 = sadd.s32 %s280, 1
      %p284 = scmp.eq.s32.totalorder %s24, 1
      %p285 = scmp.ne.s32.totalorder %s280, %s282
      %p286 = scmp.eq.s32.totalorder %s24, 0
      %p287 = por %p285, %p286
      %p288 = scmp.ne.s32.totalorder %s280, %s282
      %p289 = scmp.eq.s32.totalorder %s29, 1
      %p290 = por %p288, %p289
      %p291 = scmp.ne.s32.totalorder %s282, %s283
      %p292 = scmp.eq.s32.totalorder %s29, 0
      %p293 = por %p291, %p292
      %p294 = scmp.ne.s32.totalorder %s282, %s283
      %p295 = scmp.eq.s32.totalorder %s30, 1
      %p296 = por %p294, %p295
      %p298 = scmp.ne.s32.totalorder %s283, %s297
      %p299 = scmp.eq.s32.totalorder %s30, 0
      %p300 = por %p298, %p299
      %s302 = sadd.s32 %s301, 1
      %p305 = scmp.eq.s32.totalorder %s24, 1
      %p306 = scmp.ne.s32.totalorder %s301, %s303
      %p307 = scmp.eq.s32.totalorder %s24, 0
      %p308 = por %p306, %p307
      %p309 = scmp.ne.s32.totalorder %s301, %s303
      %p310 = scmp.eq.s32.totalorder %s29, 1
      %p311 = por %p309, %p310
      %p312 = scmp.ne.s32.totalorder %s303, %s304
      %p313 = scmp.eq.s32.totalorder %s29, 0
      %p314 = por %p312, %p313
      %p315 = scmp.ne.s32.totalorder %s303, %s304
      %p316 = scmp.eq.s32.totalorder %s30, 1
      %p317 = por %p315, %p316
      %p319 = scmp.ne.s32.totalorder %s304, %s318
      %p320 = scmp.eq.s32.totalorder %s30, 0
      %p321 = por %p319, %p320
      %s323 = sadd.s32 %s322, 1
      %p326 = scmp.eq.s32.totalorder %s24, 1
      %p327 = scmp.ne.s32.totalorder %s322, %s324
      %p328 = scmp.eq.s32.totalorder %s24, 0
      %p329 = por %p327, %p328
      %p330 = scmp.ne.s32.totalorder %s322, %s324
      %p331 = scmp.eq.s32.totalorder %s29, 1
      %p332 = por %p330, %p331
      %p333 = scmp.ne.s32.totalorder %s324, %s325
      %p334 = scmp.eq.s32.totalorder %s29, 0
      %p335 = por %p333, %p334
      %p336 = scmp.ne.s32.totalorder %s324, %s325
      %p337 = scmp.eq.s32.totalorder %s30, 1
      %p338 = por %p336, %p337
      %p340 = scmp.ne.s32.totalorder %s325, %s339
      %p341 = scmp.eq.s32.totalorder %s30, 0
      %p342 = por %p340, %p341
      %s344 = sadd.s32 %s343, 1
      %p347 = scmp.eq.s32.totalorder %s24, 1
      %p348 = scmp.ne.s32.totalorder %s343, %s345
      %p349 = scmp.eq.s32.totalorder %s24, 0
      %p350 = por %p348, %p349
      %p351 = scmp.ne.s32.totalorder %s343, %s345
      %p352 = scmp.eq.s32.totalorder %s29, 1
      %p353 = por %p351, %p352
      %p354 = scmp.ne.s32.totalorder %s345, %s346
      %p355 = scmp.eq.s32.totalorder %s29, 0
      %p356 = por %p354, %p355
      %p357 = scmp.ne.s32.totalorder %s345, %s346
      %p358 = scmp.eq.s32.totalorder %s30, 1
      %p359 = por %p357, %p358
      %p361 = scmp.ne.s32.totalorder %s346, %s360
      %p362 = scmp.eq.s32.totalorder %s30, 0
      %p363 = por %p361, %p362
      %s364 = ssub.s32 %s31, %s43
      %s365 = ssub.s32 %s32, %s39
      %s366 = sor.u32 %s364, %s365
      %p367 = scmp.eq.s32.totalorder %s366, 0
      %s369 = sadd.s32 %s368, 1
      %s370 = scalar_select %p367, %s368, %s369
      %p373 = pneg %p367
      %p374 = scmp.eq.s32.totalorder %s24, 1
      %p375 = por %p373, %p374
      %p376 = scmp.ne.s32.totalorder %s368, %s371
      %p377 = scmp.eq.s32.totalorder %s24, 0
      %p378 = por %p376, %p377
      %p379 = scmp.ne.s32.totalorder %s368, %s371
      %p380 = scmp.eq.s32.totalorder %s29, 1
      %p381 = por %p379, %p380
      %p382 = scmp.ne.s32.totalorder %s371, %s372
      %p383 = scmp.eq.s32.totalorder %s29, 0
      %p384 = por %p382, %p383
      %p385 = scmp.ne.s32.totalorder %s371, %s372
      %p386 = scmp.eq.s32.totalorder %s30, 1
      %p387 = por %p385, %p386
      %p389 = scmp.ne.s32.totalorder %s372, %s388
      %p390 = scmp.eq.s32.totalorder %s30, 0
      %p391 = por %p389, %p390
      %p392 = scmp.le.s32.totalorder 1, %s24
      %p393 = scmp.lt.s32.totalorder %s24, 3
      %p394 = pnand %p392, %p393
      %p395 = pneg %p394
      // Predicated region
      $region9: #{tpu_custom_call.1} parent=5 // pred_check
        _
      $region10: #{tpu_custom_call.1} parent=5 // pred_check_branch
        %397 = sbr.rel (%p394) target = $region12
      $region11: #{tpu_custom_call.1} parent=5 // pred_region
        %s398 = ssub.s32 %s24, 1
        // Predicated region
        $region13: #{tpu_custom_call.1} parent=11 // pred_check
          %p399 = pneg %p83
        $region14: #{tpu_custom_call.1} parent=11 // pred_check_branch
          %401 = sbr.rel (%p399) target = $region16
        $region15: #{tpu_custom_call.1} parent=11 // pred_region
          _
        $region16: #{tpu_custom_call.1} parent=11 // pred_fallthru
          _
        // Predicated region
        $region17: #{tpu_custom_call.1} parent=11 // pred_check
          %p402 = pneg %p104
        $region18: #{tpu_custom_call.1} parent=11 // pred_check_branch
          %404 = sbr.rel (%p402) target = $region20
        $region19: #{tpu_custom_call.1} parent=11 // pred_region
          _
        $region20: #{tpu_custom_call.1} parent=11 // pred_fallthru
          _
        // Predicated region
        $region21: #{tpu_custom_call.1} parent=11 // pred_check
          %p405 = pneg %p125
        $region22: #{tpu_custom_call.1} parent=11 // pred_check_branch
          %407 = sbr.rel (%p405) target = $region24
        $region23: #{tpu_custom_call.1} parent=11 // pred_region
          _
        $region24: #{tpu_custom_call.1} parent=11 // pred_fallthru
          _
        // Predicated region
        $region25: #{tpu_custom_call.1} parent=11 // pred_check
          %p408 = pneg %p146
        $region26: #{tpu_custom_call.1} parent=11 // pred_check_branch
          %410 = sbr.rel (%p408) target = $region28
        $region27: #{tpu_custom_call.1} parent=11 // pred_region
          _
        $region28: #{tpu_custom_call.1} parent=11 // pred_fallthru
          _
        // Predicated region
        $region29: #{tpu_custom_call.1} parent=11 // pred_check
          %p411 = pneg %p167
        $region30: #{tpu_custom_call.1} parent=11 // pred_check_branch
          %413 = sbr.rel (%p411) target = $region32
        $region31: #{tpu_custom_call.1} parent=11 // pred_region
          _
        $region32: #{tpu_custom_call.1} parent=11 // pred_fallthru
          _
        // Predicated region
        $region33: #{tpu_custom_call.1} parent=11 // pred_check
          %p414 = pneg %p188
        $region34: #{tpu_custom_call.1} parent=11 // pred_check_branch
          %416 = sbr.rel (%p414) target = $region36
        $region35: #{tpu_custom_call.1} parent=11 // pred_region
          _
        $region36: #{tpu_custom_call.1} parent=11 // pred_fallthru
          _
        // Predicated region
        $region37: #{tpu_custom_call.1} parent=11 // pred_check
          %p417 = pneg %p209
        $region38: #{tpu_custom_call.1} parent=11 // pred_check_branch
          %419 = sbr.rel (%p417) target = $region40
        $region39: #{tpu_custom_call.1} parent=11 // pred_region
          _
        $region40: #{tpu_custom_call.1} parent=11 // pred_fallthru
          _
        // Predicated region
        $region41: #{tpu_custom_call.1} parent=11 // pred_check
          %p420 = pneg %p230
        $region42: #{tpu_custom_call.1} parent=11 // pred_check_branch
          %422 = sbr.rel (%p420) target = $region44
        $region43: #{tpu_custom_call.1} parent=11 // pred_region
          _
        $region44: #{tpu_custom_call.1} parent=11 // pred_fallthru
          _
        // Predicated region
        $region45: #{tpu_custom_call.1} parent=11 // pred_check
          %p423 = pneg %p251
        $region46: #{tpu_custom_call.1} parent=11 // pred_check_branch
          %425 = sbr.rel (%p423) target = $region48
        $region47: #{tpu_custom_call.1} parent=11 // pred_region
          _
        $region48: #{tpu_custom_call.1} parent=11 // pred_fallthru
          _
        // Predicated region
        $region49: #{tpu_custom_call.1} parent=11 // pred_check
          %p426 = pneg %p272
        $region50: #{tpu_custom_call.1} parent=11 // pred_check_branch
          %428 = sbr.rel (%p426) target = $region52
        $region51: #{tpu_custom_call.1} parent=11 // pred_region
          _
        $region52: #{tpu_custom_call.1} parent=11 // pred_fallthru
          _
        // Predicated region
        $region53: #{tpu_custom_call.1} parent=11 // pred_check
          %p429 = pneg %p293
        $region54: #{tpu_custom_call.1} parent=11 // pred_check_branch
          %431 = sbr.rel (%p429) target = $region56
        $region55: #{tpu_custom_call.1} parent=11 // pred_region
          _
        $region56: #{tpu_custom_call.1} parent=11 // pred_fallthru
          _
        // Predicated region
        $region57: #{tpu_custom_call.1} parent=11 // pred_check
          %p432 = pneg %p314
        $region58: #{tpu_custom_call.1} parent=11 // pred_check_branch
          %434 = sbr.rel (%p432) target = $region60
        $region59: #{tpu_custom_call.1} parent=11 // pred_region
          _
        $region60: #{tpu_custom_call.1} parent=11 // pred_fallthru
          _
        // Predicated region
        $region61: #{tpu_custom_call.1} parent=11 // pred_check
          %p435 = pneg %p335
        $region62: #{tpu_custom_call.1} parent=11 // pred_check_branch
          %437 = sbr.rel (%p435) target = $region64
        $region63: #{tpu_custom_call.1} parent=11 // pred_region
          _
        $region64: #{tpu_custom_call.1} parent=11 // pred_fallthru
          _
        // Predicated region
        $region65: #{tpu_custom_call.1} parent=11 // pred_check
          %p438 = pneg %p356
        $region66: #{tpu_custom_call.1} parent=11 // pred_check_branch
          %440 = sbr.rel (%p438) target = $region68
        $region67: #{tpu_custom_call.1} parent=11 // pred_region
          _
        $region68: #{tpu_custom_call.1} parent=11 // pred_fallthru
          _
      $region12: #{tpu_custom_call.1} parent=5 // pred_fallthru
        _
      %p441 = scmp.lt.s32.totalorder %s24, 2
      // Predicated region
      $region69: #{tpu_custom_call.1} parent=5 // pred_check
        %p442 = pneg %p441
      $region70: #{tpu_custom_call.1} parent=5 // pred_check_branch
        %444 = sbr.rel (%p442) target = $region72
      $region71: #{tpu_custom_call.1} parent=5 // pred_region
        // Predicated region
        $region73: #{tpu_custom_call.1} parent=71 // pred_check
          %p445 = pneg %p56
        $region74: #{tpu_custom_call.1} parent=71 // pred_check_branch
          %447 = sbr.rel (%p445) target = $region76
        $region75: #{tpu_custom_call.1} parent=71 // pred_region
          %p448 = scmp.lt.s32.totalorder %s31, 1
          %s449 = scalar_select %p448, %s31, 1
          %s450 = smul.addr %s449, 8
          %s451 = scalar_lea.vmem %s0, %s450
        $region76: #{tpu_custom_call.1} parent=71 // pred_fallthru
          _
      $region72: #{tpu_custom_call.1} parent=5 // pred_fallthru
        _
      %p452 = scmp.le.s32.totalorder 1, %s24
      %p453 = scmp.lt.s32.totalorder %s24, 3
      %p454 = pnand %p452, %p453
      %p455 = pneg %p454
      // Predicated region
      $region77: #{tpu_custom_call.1} parent=5 // pred_check
        _
      $region78: #{tpu_custom_call.1} parent=5 // pred_check_branch
        %457 = sbr.rel (%p454) target = $region80
      $region79: #{tpu_custom_call.1} parent=5 // pred_region
        %s458 = ssub.s32 %s24, 1
        %p459 = scmp.lt.s32.totalorder %s33, 1
        %s460 = scalar_select %p459, %s33, 1
        %s461 = smul.addr %s460, 8
        %s462 = scalar_lea.vmem %s0, %s461
        %p463 = pneg %p62
        %p464 = pneg %p59
        %p465 = pneg %p83
        %p466 = pneg %p80
        %p467 = pneg %p104
        %p468 = pneg %p101
        %p469 = pneg %p125
        %p470 = pneg %p122
        %p471 = pneg %p146
        %p472 = pneg %p143
        %p473 = pneg %p167
        %p474 = pneg %p164
        %p475 = pneg %p188
        %p476 = pneg %p185
        %p477 = pneg %p209
        %p478 = pneg %p206
        %p479 = pneg %p230
        %p480 = pneg %p227
        %p481 = pneg %p251
        %p482 = pneg %p248
        %p483 = pneg %p272
        %p484 = pneg %p269
        %p485 = pneg %p293
        %p486 = pneg %p290
        %p487 = pneg %p314
        %p488 = pneg %p311
        %p489 = pneg %p335
        %p490 = pneg %p332
        %p491 = pneg %p356
        %p492 = pneg %p353
        %p493 = pneg %p384
        %p494 = pneg %p381
        %s495 = sand.u32 %s371, 1
        %s496 = scalar_lea.sflag [#allocation4], %s495
        %s497 = sand.u32 %s371, 1
        %s498 = smul.addr %s497, 8
        %s499 = scalar_lea.vmem [#allocation3], %s498
        %p500 = scmp.lt.s32.totalorder %s33, 1
        %s501 = scalar_select %p500, %s33, 1
        %s502 = smul.addr %s501, 8
        %s503 = scalar_lea.vmem %s0, %s502
        %v505 = vld [vmem:[%s503] sm:$0xff]
        %v506 = vld [vmem:[%s11] sm:$0x1]
        %v507 = vld [vmem:[%s12] sm:$0x1]
        %v508 = vld [vmem:[%s13] sm:$0x1]
        %v509 = vld [vmem:[%s14] sm:$0x1]
        %vm510 = vcmask 261120
        %v511 = vsel %vm510, %v505, 0.0
        %512 = vadd.xlane.f32.xlu0 %v511
        %v513 = vpop.xlane.xlu0 %512
        %v514 = vrcp.pop 32.0
        %v515 = vmul.f32 %v513, %v514
        %v516 = vsub.f32 %v505, %v515
        %v517 = vmul.f32 %v516, %v516
        %v518 = vsel %vm510, %v517, 0.0
        %519 = vadd.xlane.f32.xlu0 %v518
        %v520 = vpop.xlane.xlu0 %519
        %v521 = vmul.f32 %v520, 0.032258064
        %v522 = vrsqrt.pop %v521
        %v523 = vmul.f32 %v521, %v522
        %vm524 = vcmp.eq.f32.partialorder %v521, inf
        %v525 = vsel %vm524, %v521, %v523
        %vm526 = vcmp.eq.f32.partialorder %v521, 0.0
        %v527 = vand.u32 %v521, 2147483648
        %v528 = vsel %vm526, %v527, %v525
        %v529 = vadd.f32 %v528, 1e-06
        %v530 = vrcp.pop %v529
        %v531 = vmul.f32 1.0, %v530
        %v533 = vlaneseq
        %v534 = vshrl.u32 %v533, 7
        %v535 = vsub.s32 0, %v534
        %v536 = vrot.slane %v506, %v535
        %v538 = vmul.f32 %v536, %v531
        %v539 = vmul.f32 %v516, %v538
        %v541 = vlaneseq
        %v542 = vshrl.u32 %v541, 7
        %v543 = vsub.s32 0, %v542
        %v544 = vrot.slane %v507, %v543
        %v546 = vadd.f32 %v539, %v544
        %v547 = vpack.c.bf16 %v546, %v546
        %v548 = vld [vmem:[%s3] sm:$0xff]
        %v549 = vld [vmem:[%s3 + $0x8] sm:$0xff]
        %v550 = vld [vmem:[%s3 + $0x10] sm:$0xff]
        %v551 = vld [vmem:[%s3 + $0x18] sm:$0xff]
        %v552 = vld [vmem:[%s3 + $0x20] sm:$0xff]
        %v553 = vld [vmem:[%s3 + $0x28] sm:$0xff]
        %v554 = vld [vmem:[%s3 + $0x30] sm:$0xff]
        %v555 = vld [vmem:[%s3 + $0x38] sm:$0xff]
        %v556 = vld [vmem:[%s3 + $0x40] sm:$0xff]
        %v557 = vld [vmem:[%s3 + $0x48] sm:$0xff]
        %v558 = vld [vmem:[%s3 + $0x50] sm:$0xff]
        %v559 = vld [vmem:[%s3 + $0x58] sm:$0xff]
        %v560 = vld [vmem:[%s3 + $0x60] sm:$0xff]
        %v561 = vld [vmem:[%s3 + $0x68] sm:$0xff]
        %v562 = vld [vmem:[%s3 + $0x70] sm:$0xff]
        %v563 = vld [vmem:[%s3 + $0x78] sm:$0xff]
        %v564 = vld [vmem:[%s4] sm:$0xff]
        %v566 = vlaneseq
        %v567 = vshrl.u32 %v566, 7
        %v568 = vsub.s32 0, %v567
        %v569 = vrot.slane %v564, %v568
        %v570 = vlaneseq
        %v571 = vshrl.u32 %v570, 7
        %v572 = vsub.s32 1, %v571
        %v573 = vrot.slane %v564, %v572
        %v574 = vlaneseq
        %v575 = vshrl.u32 %v574, 7
        %v576 = vsub.s32 2, %v575
        %v577 = vrot.slane %v564, %v576
        %v578 = vlaneseq
        %v579 = vshrl.u32 %v578, 7
        %v580 = vsub.s32 3, %v579
        %v581 = vrot.slane %v564, %v580
        %v582 = vlaneseq
        %v583 = vshrl.u32 %v582, 7
        %v584 = vsub.s32 4, %v583
        %v585 = vrot.slane %v564, %v584
        %v586 = vlaneseq
        %v587 = vshrl.u32 %v586, 7
        %v588 = vsub.s32 5, %v587
        %v589 = vrot.slane %v564, %v588
        %v590 = vlaneseq
        %v591 = vshrl.u32 %v590, 7
        %v592 = vsub.s32 6, %v591
        %v593 = vrot.slane %v564, %v592
        %v594 = vlaneseq
        %v595 = vshrl.u32 %v594, 7
        %v596 = vsub.s32 7, %v595
        %v597 = vrot.slane %v564, %v596
        %v622 = vunpack.c.l.b16 %v548
        %v623 = vunpack.c.h.b16 %v548
        %v624 = vunpack.c.l.b16 %v549
        %v625 = vunpack.c.h.b16 %v549
        %v626 = vunpack.c.l.b16 %v550
        %v627 = vunpack.c.h.b16 %v550
        %v628 = vunpack.c.l.b16 %v551
        %v629 = vunpack.c.h.b16 %v551
        %v630 = vunpack.c.l.b16 %v552
        %v631 = vunpack.c.h.b16 %v552
        %v632 = vunpack.c.l.b16 %v553
        %v633 = vunpack.c.h.b16 %v553
        %v634 = vunpack.c.l.b16 %v554
        %v635 = vunpack.c.h.b16 %v554
        %v636 = vunpack.c.l.b16 %v555
        %v637 = vunpack.c.h.b16 %v555
        %v638 = vunpack.c.l.b16 %v556
        %v639 = vunpack.c.h.b16 %v556
        %v640 = vunpack.c.l.b16 %v557
        %v641 = vunpack.c.h.b16 %v557
        %v642 = vunpack.c.l.b16 %v558
        %v643 = vunpack.c.h.b16 %v558
        %v644 = vunpack.c.l.b16 %v559
        %v645 = vunpack.c.h.b16 %v559
        %v646 = vunpack.c.l.b16 %v560
        %v647 = vunpack.c.h.b16 %v560
        %v648 = vunpack.c.l.b16 %v561
        %v649 = vunpack.c.h.b16 %v561
        %v650 = vunpack.c.l.b16 %v562
        %v651 = vunpack.c.h.b16 %v562
        %v652 = vunpack.c.l.b16 %v563
        %v653 = vunpack.c.h.b16 %v563
        %v654 = vpack.c.b16 %v630, %v622
        %v655 = vpack.c.b16 %v631, %v623
        %v656 = vpack.c.b16 %v632, %v624
        %v657 = vpack.c.b16 %v633, %v625
        %v658 = vpack.c.b16 %v634, %v626
        %v659 = vpack.c.b16 %v635, %v627
        %v660 = vpack.c.b16 %v636, %v628
        %v661 = vpack.c.b16 %v637, %v629
        %v662 = vpack.c.b16 %v646, %v638
        %v663 = vpack.c.b16 %v647, %v639
        %v664 = vpack.c.b16 %v648, %v640
        %v665 = vpack.c.b16 %v649, %v641
        %v666 = vpack.c.b16 %v650, %v642
        %v667 = vpack.c.b16 %v651, %v643
        %v668 = vpack.c.b16 %v652, %v644
        %v669 = vpack.c.b16 %v653, %v645
        %v687 = vsel %vm510, %v547, 0
        %689 = vmatprep.subr.bf16.mxu0 %v655
        %690 = vmatpush1.bf16.msra.mxu0 %v654
        %691 = vmatprep.subr.bf16.mxu0 %v663
        %692 = vmatpush1.bf16.msra.mxu0 %v662
        %693 = vmatprep.subr.bf16.mxu0 0
        %694 = vmatpush1.bf16.msra.mxu0 0
        %695 = vmatprep.subr.bf16.mxu0 0
        %696 = vmatpush1.bf16.msra.mxu0 0
        %697 = vmatprep.subr.bf16.mxu0 0
        %698 = vmatpush1.bf16.msra.mxu0 0
        %699 = vmatprep.subr.bf16.mxu0 0
        %700 = vmatpush1.bf16.msra.mxu0 0
        %701 = vmatprep.subr.bf16.mxu0 0
        %702 = vmatpush1.bf16.msra.mxu0 0
        %703 = vmatprep.subr.bf16.mxu0 0
        %704 = vmatpush1.bf16.msra.mxu0 0
        %705 = vmatprep.subr.bf16.mxu0 0
        %706 = vmatpush1.bf16.msra.mxu0 0
        %707 = vmatprep.subr.bf16.mxu0 0
        %708 = vmatpush1.bf16.msra.mxu0 0
        %709 = vmatprep.subr.bf16.mxu0 0
        %710 = vmatpush1.bf16.msra.mxu0 0
        %711 = vmatprep.subr.bf16.mxu0 0
        %712 = vmatpush1.bf16.msra.mxu0 0
        %713 = vmatprep.subr.bf16.mxu0 0
        %714 = vmatpush1.bf16.msra.mxu0 0
        %715 = vmatprep.subr.bf16.mxu0 0
        %716 = vmatpush1.bf16.msra.mxu0 0
        %717 = vmatprep.subr.bf16.mxu0 0
        %718 = vmatpush1.bf16.msra.mxu0 0
        %719 = vmatprep.subr.bf16.mxu0 0
        %720 = vmatpush1.bf16.msra.mxu0 0
        %721 = vmatprep.mubr.bf16.mxu0 0
        %722 = vmatmul.mubr.bf16.gmra.mrb[0].mxu0 %v687
        %v723 = vpop.f32.mrb[0].mxu0
        %v724 = vadd.f32 %v569, %v723
        %v725 = vpop.f32.mrb[0].mxu0
        %v726 = vadd.f32 %v573, %v725
        %v727 = vpop.f32.mrb[0].mxu0
        %v728 = vpop.f32.mrb[0].mxu0
        %729 = vdwg.mxu0
        %730 = vmatprep.subr.bf16.mxu0 %v657
        %731 = vmatpush1.bf16.msra.mxu0 %v656
        %732 = vmatprep.subr.bf16.mxu0 %v665
        %733 = vmatpush1.bf16.msra.mxu0 %v664
        %734 = vmatprep.subr.bf16.mxu0 0
        %735 = vmatpush1.bf16.msra.mxu0 0
        %736 = vmatprep.subr.bf16.mxu0 0
        %737 = vmatpush1.bf16.msra.mxu0 0
        %738 = vmatprep.subr.bf16.mxu0 0
        %739 = vmatpush1.bf16.msra.mxu0 0
        %740 = vmatprep.subr.bf16.mxu0 0
        %741 = vmatpush1.bf16.msra.mxu0 0
        %742 = vmatprep.subr.bf16.mxu0 0
        %743 = vmatpush1.bf16.msra.mxu0 0
        %744 = vmatprep.subr.bf16.mxu0 0
        %745 = vmatpush1.bf16.msra.mxu0 0
        %746 = vmatprep.subr.bf16.mxu0 0
        %747 = vmatpush1.bf16.msra.mxu0 0
        %748 = vmatprep.subr.bf16.mxu0 0
        %749 = vmatpush1.bf16.msra.mxu0 0
        %750 = vmatprep.subr.bf16.mxu0 0
        %751 = vmatpush1.bf16.msra.mxu0 0
        %752 = vmatprep.subr.bf16.mxu0 0
        %753 = vmatpush1.bf16.msra.mxu0 0
        %754 = vmatprep.subr.bf16.mxu0 0
        %755 = vmatpush1.bf16.msra.mxu0 0
        %756 = vmatprep.subr.bf16.mxu0 0
        %757 = vmatpush1.bf16.msra.mxu0 0
        %758 = vmatprep.subr.bf16.mxu0 0
        %759 = vmatpush1.bf16.msra.mxu0 0
        %760 = vmatprep.subr.bf16.mxu0 0
        %761 = vmatpush1.bf16.msra.mxu0 0
        %762 = vmatprep.mubr.bf16.mxu0 0
        %763 = vmatmul.mubr.bf16.gmra.mrb[0].mxu0 %v687
        %v764 = vpop.f32.mrb[0].mxu0
        %v765 = vadd.f32 %v577, %v764
        %v766 = vpop.f32.mrb[0].mxu0
        %v767 = vadd.f32 %v581, %v766
        %v768 = vpop.f32.mrb[0].mxu0
        %v769 = vpop.f32.mrb[0].mxu0
        %770 = vdwg.mxu0
        %771 = vmatprep.subr.bf16.mxu0 %v659
        %772 = vmatpush1.bf16.msra.mxu0 %v658
        %773 = vmatprep.subr.bf16.mxu0 %v667
        %774 = vmatpush1.bf16.msra.mxu0 %v666
        %775 = vmatprep.subr.bf16.mxu0 0
        %776 = vmatpush1.bf16.msra.mxu0 0
        %777 = vmatprep.subr.bf16.mxu0 0
        %778 = vmatpush1.bf16.msra.mxu0 0
        %779 = vmatprep.subr.bf16.mxu0 0
        %780 = vmatpush1.bf16.msra.mxu0 0
        %781 = vmatprep.subr.bf16.mxu0 0
        %782 = vmatpush1.bf16.msra.mxu0 0
        %783 = vmatprep.subr.bf16.mxu0 0
        %784 = vmatpush1.bf16.msra.mxu0 0
        %785 = vmatprep.subr.bf16.mxu0 0
        %786 = vmatpush1.bf16.msra.mxu0 0
        %787 = vmatprep.subr.bf16.mxu0 0
        %788 = vmatpush1.bf16.msra.mxu0 0
        %789 = vmatprep.subr.bf16.mxu0 0
        %790 = vmatpush1.bf16.msra.mxu0 0
        %791 = vmatprep.subr.bf16.mxu0 0
        %792 = vmatpush1.bf16.msra.mxu0 0
        %793 = vmatprep.subr.bf16.mxu0 0
        %794 = vmatpush1.bf16.msra.mxu0 0
        %795 = vmatprep.subr.bf16.mxu0 0
        %796 = vmatpush1.bf16.msra.mxu0 0
        %797 = vmatprep.subr.bf16.mxu0 0
        %798 = vmatpush1.bf16.msra.mxu0 0
        %799 = vmatprep.subr.bf16.mxu0 0
        %800 = vmatpush1.bf16.msra.mxu0 0
        %801 = vmatprep.subr.bf16.mxu0 0
        %802 = vmatpush1.bf16.msra.mxu0 0
        %803 = vmatprep.mubr.bf16.mxu0 0
        %804 = vmatmul.mubr.bf16.gmra.mrb[0].mxu0 %v687
        %v805 = vpop.f32.mrb[0].mxu0
        %v806 = vadd.f32 %v585, %v805
        %v807 = vpop.f32.mrb[0].mxu0
        %v808 = vadd.f32 %v589, %v807
        %v809 = vpop.f32.mrb[0].mxu0
        %v810 = vpop.f32.mrb[0].mxu0
        %811 = vdwg.mxu0
        %812 = vmatprep.subr.bf16.mxu0 %v661
        %813 = vmatpush1.bf16.msra.mxu0 %v660
        %814 = vmatprep.subr.bf16.mxu0 %v669
        %815 = vmatpush1.bf16.msra.mxu0 %v668
        %816 = vmatprep.subr.bf16.mxu0 0
        %817 = vmatpush1.bf16.msra.mxu0 0
        %818 = vmatprep.subr.bf16.mxu0 0
        %819 = vmatpush1.bf16.msra.mxu0 0
        %820 = vmatprep.subr.bf16.mxu0 0
        %821 = vmatpush1.bf16.msra.mxu0 0
        %822 = vmatprep.subr.bf16.mxu0 0
        %823 = vmatpush1.bf16.msra.mxu0 0
        %824 = vmatprep.subr.bf16.mxu0 0
        %825 = vmatpush1.bf16.msra.mxu0 0
        %826 = vmatprep.subr.bf16.mxu0 0
        %827 = vmatpush1.bf16.msra.mxu0 0
        %828 = vmatprep.subr.bf16.mxu0 0
        %829 = vmatpush1.bf16.msra.mxu0 0
        %830 = vmatprep.subr.bf16.mxu0 0
        %831 = vmatpush1.bf16.msra.mxu0 0
        %832 = vmatprep.subr.bf16.mxu0 0
        %833 = vmatpush1.bf16.msra.mxu0 0
        %834 = vmatprep.subr.bf16.mxu0 0
        %835 = vmatpush1.bf16.msra.mxu0 0
        %836 = vmatprep.subr.bf16.mxu0 0
        %837 = vmatpush1.bf16.msra.mxu0 0
        %838 = vmatprep.subr.bf16.mxu0 0
        %839 = vmatpush1.bf16.msra.mxu0 0
        %840 = vmatprep.subr.bf16.mxu0 0
        %841 = vmatpush1.bf16.msra.mxu0 0
        %842 = vmatprep.subr.bf16.mxu0 0
        %843 = vmatpush1.bf16.msra.mxu0 0
        %844 = vmatprep.mubr.bf16.mxu0 0
        %845 = vmatmul.mubr.bf16.gmra.mrb[0].mxu0 %v687
        %v846 = vpop.f32.mrb[0].mxu0
        %v847 = vadd.f32 %v593, %v846
        %v848 = vpop.f32.mrb[0].mxu0
        %v849 = vadd.f32 %v597, %v848
        %v850 = vpop.f32.mrb[0].mxu0
        %v851 = vpop.f32.mrb[0].mxu0
        %852 = vdwg.mxu0
        %v853 = vld [vmem:[%s1] sm:$0xff]
        %v854 = vld [vmem:[%s1 + $0x8] sm:$0xff]
        %v855 = vld [vmem:[%s1 + $0x10] sm:$0xff]
        %v856 = vld [vmem:[%s1 + $0x18] sm:$0xff]
        %v857 = vld [vmem:[%s1 + $0x20] sm:$0xff]
        %v858 = vld [vmem:[%s1 + $0x28] sm:$0xff]
        %v859 = vld [vmem:[%s1 + $0x30] sm:$0xff]
        %v860 = vld [vmem:[%s1 + $0x38] sm:$0xff]
        %v861 = vld [vmem:[%s2] sm:$0xf]
        %v863 = vlaneseq
        %v864 = vshrl.u32 %v863, 7
        %v865 = vsub.s32 0, %v864
        %v866 = vrot.slane %v861, %v865
        %v867 = vlaneseq
        %v868 = vshrl.u32 %v867, 7
        %v869 = vsub.s32 1, %v868
        %v870 = vrot.slane %v861, %v869
        %v871 = vlaneseq
        %v872 = vshrl.u32 %v871, 7
        %v873 = vsub.s32 2, %v872
        %v874 = vrot.slane %v861, %v873
        %v875 = vlaneseq
        %v876 = vshrl.u32 %v875, 7
        %v877 = vsub.s32 3, %v876
        %v878 = vrot.slane %v861, %v877
        %v891 = vunpack.c.l.b16 %v853
        %v892 = vunpack.c.h.b16 %v853
        %v893 = vunpack.c.l.b16 %v854
        %v894 = vunpack.c.h.b16 %v854
        %v895 = vunpack.c.l.b16 %v855
        %v896 = vunpack.c.h.b16 %v855
        %v897 = vunpack.c.l.b16 %v856
        %v898 = vunpack.c.h.b16 %v856
        %v899 = vunpack.c.l.b16 %v857
        %v900 = vunpack.c.h.b16 %v857
        %v901 = vunpack.c.l.b16 %v858
        %v902 = vunpack.c.h.b16 %v858
        %v903 = vunpack.c.l.b16 %v859
        %v904 = vunpack.c.h.b16 %v859
        %v905 = vunpack.c.l.b16 %v860
        %v906 = vunpack.c.h.b16 %v860
        %v907 = vpack.c.b16 %v895, %v891
        %v908 = vpack.c.b16 %v896, %v892
        %v909 = vpack.c.b16 %v897, %v893
        %v910 = vpack.c.b16 %v898, %v894
        %v911 = vpack.c.b16 %v903, %v899
        %v912 = vpack.c.b16 %v904, %v900
        %v913 = vpack.c.b16 %v905, %v901
        %v914 = vpack.c.b16 %v906, %v902
        %923 = vmatprep.subr.bf16.mxu0 %v908
        %924 = vmatpush1.bf16.msra.mxu0 %v907
        %925 = vmatprep.subr.bf16.mxu0 %v912
        %926 = vmatpush1.bf16.msra.mxu0 %v911
        %927 = vmatprep.subr.bf16.mxu0 0
        %928 = vmatpush1.bf16.msra.mxu0 0
        %929 = vmatprep.subr.bf16.mxu0 0
        %930 = vmatpush1.bf16.msra.mxu0 0
        %931 = vmatprep.subr.bf16.mxu0 0
        %932 = vmatpush1.bf16.msra.mxu0 0
        %933 = vmatprep.subr.bf16.mxu0 0
        %934 = vmatpush1.bf16.msra.mxu0 0
        %935 = vmatprep.subr.bf16.mxu0 0
        %936 = vmatpush1.bf16.msra.mxu0 0
        %937 = vmatprep.subr.bf16.mxu0 0
        %938 = vmatpush1.bf16.msra.mxu0 0
        %939 = vmatprep.subr.bf16.mxu0 0
        %940 = vmatpush1.bf16.msra.mxu0 0
        %941 = vmatprep.subr.bf16.mxu0 0
        %942 = vmatpush1.bf16.msra.mxu0 0
        %943 = vmatprep.subr.bf16.mxu0 0
        %944 = vmatpush1.bf16.msra.mxu0 0
        %945 = vmatprep.subr.bf16.mxu0 0
        %946 = vmatpush1.bf16.msra.mxu0 0
        %947 = vmatprep.subr.bf16.mxu0 0
        %948 = vmatpush1.bf16.msra.mxu0 0
        %949 = vmatprep.subr.bf16.mxu0 0
        %950 = vmatpush1.bf16.msra.mxu0 0
        %951 = vmatprep.subr.bf16.mxu0 0
        %952 = vmatpush1.bf16.msra.mxu0 0
        %953 = vmatprep.subr.bf16.mxu0 0
        %954 = vmatpush1.bf16.msra.mxu0 0
        %955 = vmatprep.mubr.bf16.mxu0 0
        %956 = vmatmul.mubr.bf16.gmra.mrb[0].mxu0 %v687
        %v957 = vpop.f32.mrb[0].mxu0
        %v958 = vadd.f32 %v866, %v957
        %v959 = vpop.f32.mrb[0].mxu0
        %v960 = vadd.f32 %v870, %v959
        %v961 = vpop.f32.mrb[0].mxu0
        %v962 = vpop.f32.mrb[0].mxu0
        %963 = vdwg.mxu0
        %964 = vmatprep.subr.bf16.mxu0 %v910
        %965 = vmatpush1.bf16.msra.mxu0 %v909
        %966 = vmatprep.subr.bf16.mxu0 %v914
        %967 = vmatpush1.bf16.msra.mxu0 %v913
        %968 = vmatprep.subr.bf16.mxu0 0
        %969 = vmatpush1.bf16.msra.mxu0 0
        %970 = vmatprep.subr.bf16.mxu0 0
        %971 = vmatpush1.bf16.msra.mxu0 0
        %972 = vmatprep.subr.bf16.mxu0 0
        %973 = vmatpush1.bf16.msra.mxu0 0
        %974 = vmatprep.subr.bf16.mxu0 0
        %975 = vmatpush1.bf16.msra.mxu0 0
        %976 = vmatprep.subr.bf16.mxu0 0
        %977 = vmatpush1.bf16.msra.mxu0 0
        %978 = vmatprep.subr.bf16.mxu0 0
        %979 = vmatpush1.bf16.msra.mxu0 0
        %980 = vmatprep.subr.bf16.mxu0 0
        %981 = vmatpush1.bf16.msra.mxu0 0
        %982 = vmatprep.subr.bf16.mxu0 0
        %983 = vmatpush1.bf16.msra.mxu0 0
        %984 = vmatprep.subr.bf16.mxu0 0
        %985 = vmatpush1.bf16.msra.mxu0 0
        %986 = vmatprep.subr.bf16.mxu0 0
        %987 = vmatpush1.bf16.msra.mxu0 0
        %988 = vmatprep.subr.bf16.mxu0 0
        %989 = vmatpush1.bf16.msra.mxu0 0
        %990 = vmatprep.subr.bf16.mxu0 0
        %991 = vmatpush1.bf16.msra.mxu0 0
        %992 = vmatprep.subr.bf16.mxu0 0
        %993 = vmatpush1.bf16.msra.mxu0 0
        %994 = vmatprep.subr.bf16.mxu0 0
        %995 = vmatpush1.bf16.msra.mxu0 0
        %996 = vmatprep.mubr.bf16.mxu0 0
        %997 = vmatmul.mubr.bf16.gmra.mrb[0].mxu0 %v687
        %v998 = vpop.f32.mrb[0].mxu0
        %v999 = vadd.f32 %v874, %v998
        %v1000 = vpop.f32.mrb[0].mxu0
        %v1001 = vadd.f32 %v878, %v1000
        %v1002 = vpop.f32.mrb[0].mxu0
        %v1003 = vpop.f32.mrb[0].mxu0
        %1004 = vdwg.mxu0
        %v1005 = vpack.c.bf16 %v958, %v958
        %v1006 = vpack.c.bf16 %v724, %v724
        %v1007 = vpack.c.bf16 %v806, %v806
        %1008 = vmatprep.subr.bf16.mxu0 0
        %1009 = vmatpush1.bf16.xpose.msra.mxu0 %v1006
        %1010 = vmatprep.subr.bf16.mxu0 0
        %1011 = vmatpush1.bf16.xpose.msra.mxu0 0
        %1012 = vmatprep.subr.bf16.mxu0 0
        %1013 = vmatpush1.bf16.xpose.msra.mxu0 0
        %1014 = vmatprep.subr.bf16.mxu0 0
        %1015 = vmatpush1.bf16.xpose.msra.mxu0 0
        %1016 = vmatprep.subr.bf16.mxu0 0
        %1017 = vmatpush1.bf16.xpose.msra.mxu0 0
        %1018 = vmatprep.subr.bf16.mxu0 0
        %1019 = vmatpush1.bf16.xpose.msra.mxu0 0
        %1020 = vmatprep.subr.bf16.mxu0 0
        %1021 = vmatpush1.bf16.xpose.msra.mxu0 0
        %1022 = vmatprep.subr.bf16.mxu0 0
        %1023 = vmatpush1.bf16.xpose.msra.mxu0 0
        %1024 = vmatprep.subr.bf16.mxu0 0
        %1025 = vmatpush1.bf16.xpose.msra.mxu0 0
        %1026 = vmatprep.subr.bf16.mxu0 0
        %1027 = vmatpush1.bf16.xpose.msra.mxu0 0
        %1028 = vmatprep.subr.bf16.mxu0 0
        %1029 = vmatpush1.bf16.xpose.msra.mxu0 0
        %1030 = vmatprep.subr.bf16.mxu0 0
        %1031 = vmatpush1.bf16.xpose.msra.mxu0 0
        %1032 = vmatprep.subr.bf16.mxu0 0
        %1033 = vmatpush1.bf16.xpose.msra.mxu0 0
        %1034 = vmatprep.subr.bf16.mxu0 0
        %1035 = vmatpush1.bf16.xpose.msra.mxu0 0
        %1036 = vmatprep.subr.bf16.mxu0 0
        %1037 = vmatpush1.bf16.xpose.msra.mxu0 0
        %1038 = vmatprep.subr.bf16.mxu0 0
        %1039 = vmatpush1.bf16.xpose.msra.mxu0 0
        %1040 = vmatprep.mubr.bf16.mxu0 0
        %1041 = vmatmul.mubr.bf16.gmra.mrb[0].mxu0 %v1005
        %v1042 = vpop.f32.mrb[0].mxu0
        %v1043 = vadd.f32 0.0, %v1042
        %v1044 = vpop.f32.mrb[0].mxu0
        %v1045 = vpop.f32.mrb[0].mxu0
        %v1046 = vpop.f32.mrb[0].mxu0
        %1047 = vdwg.mxu0
        %vm1048 = vcmask 64512
        %v1049 = vsel %vm1048, %v1043, -inf
        %1050 = vmax.xlane.f32.xlu0 %v1049
        %v1051 = vpop.xlane.xlu0 %1050
        %v1052 = vsub.f32 %v1043, %v1051
        %v1053 = vmul.f32 %v1052, 1.442695
        %v1054 = vpow.pop %v1053
        %v1055 = vsel %vm1048, %v1054, 0.0
        %1056 = vadd.xlane.f32.xlu0 %v1055
        %v1057 = vpop.xlane.xlu0 %1056
        %v1058 = vrcp.pop %v1057
        %v1059 = vpack.c.bf16 %v1054, %v1054
        %v1061 = vsel %vm1048, %v1059, 0
        %vm1063 = vcmask 1043456
        %v1065 = vsel %vm1063, %v1007, 0
        %1067 = vmatprep.subr.bf16.mxu0 0
        %1068 = vmatpush1.bf16.msra.mxu0 %v1065
        %1069 = vmatprep.subr.bf16.mxu0 0
        %1070 = vmatpush1.bf16.msra.mxu0 0
        %1071 = vmatprep.subr.bf16.mxu0 0
        %1072 = vmatpush1.bf16.msra.mxu0 0
        %1073 = vmatprep.subr.bf16.mxu0 0
        %1074 = vmatpush1.bf16.msra.mxu0 0
        %1075 = vmatprep.subr.bf16.mxu0 0
        %1076 = vmatpush1.bf16.msra.mxu0 0
        %1077 = vmatprep.subr.bf16.mxu0 0
        %1078 = vmatpush1.bf16.msra.mxu0 0
        %1079 = vmatprep.subr.bf16.mxu0 0
        %1080 = vmatpush1.bf16.msra.mxu0 0
        %1081 = vmatprep.subr.bf16.mxu0 0
        %1082 = vmatpush1.bf16.msra.mxu0 0
        %1083 = vmatprep.subr.bf16.mxu0 0
        %1084 = vmatpush1.bf16.msra.mxu0 0
        %1085 = vmatprep.subr.bf16.mxu0 0
        %1086 = vmatpush1.bf16.msra.mxu0 0
        %1087 = vmatprep.subr.bf16.mxu0 0
        %1088 = vmatpush1.bf16.msra.mxu0 0
        %1089 = vmatprep.subr.bf16.mxu0 0
        %1090 = vmatpush1.bf16.msra.mxu0 0
        %1091 = vmatprep.subr.bf16.mxu0 0
        %1092 = vmatpush1.bf16.msra.mxu0 0
        %1093 = vmatprep.subr.bf16.mxu0 0
        %1094 = vmatpush1.bf16.msra.mxu0 0
        %1095 = vmatprep.subr.bf16.mxu0 0
        %1096 = vmatpush1.bf16.msra.mxu0 0
        %1097 = vmatprep.subr.bf16.mxu0 0
        %1098 = vmatpush1.bf16.msra.mxu0 0
        %1099 = vmatprep.mubr.bf16.mxu0 0
        %1100 = vmatmul.mubr.bf16.gmra.mrb[0].mxu0 %v1061
        %v1101 = vpop.f32.mrb[0].mxu0
        %v1102 = vadd.f32 0.0, %v1101
        %v1103 = vpop.f32.mrb[0].mxu0
        %v1104 = vpop.f32.mrb[0].mxu0
        %v1105 = vpop.f32.mrb[0].mxu0
        %1106 = vdwg.mxu0
        %v1107 = vmul.f32 %v1102, %v1058
        %1108 = vst [vmem:[#allocation2] sm:$0xff] %v1107
        %v1109 = vpack.c.bf16 %v960, %v960
        %v1110 = vpack.c.bf16 %v726, %v726
        %v1111 = vpack.c.bf16 %v808, %v808
        %1112 = vmatprep.subr.bf16.mxu0 0
        %1113 = vmatpush1.bf16.xpose.msra.mxu0 %v1110
        %1114 = vmatprep.subr.bf16.mxu0 0
        %1115 = vmatpush1.bf16.xpose.msra.mxu0 0
        %1116 = vmatprep.subr.bf16.mxu0 0
        %1117 = vmatpush1.bf16.xpose.msra.mxu0 0
        %1118 = vmatprep.subr.bf16.mxu0 0
        %1119 = vmatpush1.bf16.xpose.msra.mxu0 0
        %1120 = vmatprep.subr.bf16.mxu0 0
        %1121 = vmatpush1.bf16.xpose.msra.mxu0 0
        %1122 = vmatprep.subr.bf16.mxu0 0
        %1123 = vmatpush1.bf16.xpose.msra.mxu0 0
        %1124 = vmatprep.subr.bf16.mxu0 0
        %1125 = vmatpush1.bf16.xpose.msra.mxu0 0
        %1126 = vmatprep.subr.bf16.mxu0 0
        %1127 = vmatpush1.bf16.xpose.msra.mxu0 0
        %1128 = vmatprep.subr.bf16.mxu0 0
        %1129 = vmatpush1.bf16.xpose.msra.mxu0 0
        %1130 = vmatprep.subr.bf16.mxu0 0
        %1131 = vmatpush1.bf16.xpose.msra.mxu0 0
        %1132 = vmatprep.subr.bf16.mxu0 0
        %1133 = vmatpush1.bf16.xpose.msra.mxu0 0
        %1134 = vmatprep.subr.bf16.mxu0 0
        %1135 = vmatpush1.bf16.xpose.msra.mxu0 0
        %1136 = vmatprep.subr.bf16.mxu0 0
        %1137 = vmatpush1.bf16.xpose.msra.mxu0 0
        %1138 = vmatprep.subr.bf16.mxu0 0
        %1139 = vmatpush1.bf16.xpose.msra.mxu0 0
        %1140 = vmatprep.subr.bf16.mxu0 0
        %1141 = vmatpush1.bf16.xpose.msra.mxu0 0
        %1142 = vmatprep.subr.bf16.mxu0 0
        %1143 = vmatpush1.bf16.xpose.msra.mxu0 0
        %1144 = vmatprep.mubr.bf16.mxu0 0
        %1145 = vmatmul.mubr.bf16.gmra.mrb[0].mxu0 %v1109
        %v1146 = vpop.f32.mrb[0].mxu0
        %v1147 = vadd.f32 0.0, %v1146
        %v1148 = vpop.f32.mrb[0].mxu0
        %v1149 = vpop.f32.mrb[0].mxu0
        %v1150 = vpop.f32.mrb[0].mxu0
        %1151 = vdwg.mxu0
        %v1152 = vsel %vm1048, %v1147, -inf
        %1153 = vmax.xlane.f32.xlu0 %v1152
        %v1154 = vpop.xlane.xlu0 %1153
        %v1155 = vsub.f32 %v1147, %v1154
        %v1156 = vmul.f32 %v1155, 1.442695
        %v1157 = vpow.pop %v1156
        %v1158 = vsel %vm1048, %v1157, 0.0
        %1159 = vadd.xlane.f32.xlu0 %v1158
        %v1160 = vpop.xlane.xlu0 %1159
        %v1161 = vrcp.pop %v1160
        %v1162 = vpack.c.bf16 %v1157, %v1157
        %v1164 = vsel %vm1048, %v1162, 0
        %v1167 = vsel %vm1063, %v1111, 0
        %1169 = vmatprep.subr.bf16.mxu0 0
        %1170 = vmatpush1.bf16.msra.mxu0 %v1167
        %1171 = vmatprep.subr.bf16.mxu0 0
        %1172 = vmatpush1.bf16.msra.mxu0 0
        %1173 = vmatprep.subr.bf16.mxu0 0
        %1174 = vmatpush1.bf16.msra.mxu0 0
        %1175 = vmatprep.subr.bf16.mxu0 0
        %1176 = vmatpush1.bf16.msra.mxu0 0
        %1177 = vmatprep.subr.bf16.mxu0 0
        %1178 = vmatpush1.bf16.msra.mxu0 0
        %1179 = vmatprep.subr.bf16.mxu0 0
        %1180 = vmatpush1.bf16.msra.mxu0 0
        %1181 = vmatprep.subr.bf16.mxu0 0
        %1182 = vmatpush1.bf16.msra.mxu0 0
        %1183 = vmatprep.subr.bf16.mxu0 0
        %1184 = vmatpush1.bf16.msra.mxu0 0
        %1185 = vmatprep.subr.bf16.mxu0 0
        %1186 = vmatpush1.bf16.msra.mxu0 0
        %1187 = vmatprep.subr.bf16.mxu0 0
        %1188 = vmatpush1.bf16.msra.mxu0 0
        %1189 = vmatprep.subr.bf16.mxu0 0
        %1190 = vmatpush1.bf16.msra.mxu0 0
        %1191 = vmatprep.subr.bf16.mxu0 0
        %1192 = vmatpush1.bf16.msra.mxu0 0
        %1193 = vmatprep.subr.bf16.mxu0 0
        %1194 = vmatpush1.bf16.msra.mxu0 0
        %1195 = vmatprep.subr.bf16.mxu0 0
        %1196 = vmatpush1.bf16.msra.mxu0 0
        %1197 = vmatprep.subr.bf16.mxu0 0
        %1198 = vmatpush1.bf16.msra.mxu0 0
        %1199 = vmatprep.subr.bf16.mxu0 0
        %1200 = vmatpush1.bf16.msra.mxu0 0
        %1201 = vmatprep.mubr.bf16.mxu0 0
        %1202 = vmatmul.mubr.bf16.gmra.mrb[0].mxu0 %v1164
        %v1203 = vpop.f32.mrb[0].mxu0
        %v1204 = vadd.f32 0.0, %v1203
        %v1205 = vpop.f32.mrb[0].mxu0
        %v1206 = vpop.f32.mrb[0].mxu0
        %v1207 = vpop.f32.mrb[0].mxu0
        %1208 = vdwg.mxu0
        %v1209 = vmul.f32 %v1204, %v1161
        %1210 = vst [vmem:[#allocation2 + $0x8] sm:$0xff] %v1209
        %v1211 = vpack.c.bf16 %v999, %v999
        %v1212 = vpack.c.bf16 %v765, %v765
        %v1213 = vpack.c.bf16 %v847, %v847
        %1214 = vmatprep.subr.bf16.mxu0 0
        %1215 = vmatpush1.bf16.xpose.msra.mxu0 %v1212
        %1216 = vmatprep.subr.bf16.mxu0 0
        %1217 = vmatpush1.bf16.xpose.msra.mxu0 0
        %1218 = vmatprep.subr.bf16.mxu0 0
        %1219 = vmatpush1.bf16.xpose.msra.mxu0 0
        %1220 = vmatprep.subr.bf16.mxu0 0
        %1221 = vmatpush1.bf16.xpose.msra.mxu0 0
        %1222 = vmatprep.subr.bf16.mxu0 0
        %1223 = vmatpush1.bf16.xpose.msra.mxu0 0
        %1224 = vmatprep.subr.bf16.mxu0 0
        %1225 = vmatpush1.bf16.xpose.msra.mxu0 0
        %1226 = vmatprep.subr.bf16.mxu0 0
        %1227 = vmatpush1.bf16.xpose.msra.mxu0 0
        %1228 = vmatprep.subr.bf16.mxu0 0
        %1229 = vmatpush1.bf16.xpose.msra.mxu0 0
        %1230 = vmatprep.subr.bf16.mxu0 0
        %1231 = vmatpush1.bf16.xpose.msra.mxu0 0
        %1232 = vmatprep.subr.bf16.mxu0 0
        %1233 = vmatpush1.bf16.xpose.msra.mxu0 0
        %1234 = vmatprep.subr.bf16.mxu0 0
        %1235 = vmatpush1.bf16.xpose.msra.mxu0 0
        %1236 = vmatprep.subr.bf16.mxu0 0
        %1237 = vmatpush1.bf16.xpose.msra.mxu0 0
        %1238 = vmatprep.subr.bf16.mxu0 0
        %1239 = vmatpush1.bf16.xpose.msra.mxu0 0
        %1240 = vmatprep.subr.bf16.mxu0 0
        %1241 = vmatpush1.bf16.xpose.msra.mxu0 0
        %1242 = vmatprep.subr.bf16.mxu0 0
        %1243 = vmatpush1.bf16.xpose.msra.mxu0 0
        %1244 = vmatprep.subr.bf16.mxu0 0
        %1245 = vmatpush1.bf16.xpose.msra.mxu0 0
        %1246 = vmatprep.mubr.bf16.mxu0 0
        %1247 = vmatmul.mubr.bf16.gmra.mrb[0].mxu0 %v1211
        %v1248 = vpop.f32.mrb[0].mxu0
        %v1249 = vadd.f32 0.0, %v1248
        %v1250 = vpop.f32.mrb[0].mxu0
        %v1251 = vpop.f32.mrb[0].mxu0
        %v1252 = vpop.f32.mrb[0].mxu0
        %1253 = vdwg.mxu0
        %v1254 = vsel %vm1048, %v1249, -inf
        %1255 = vmax.xlane.f32.xlu0 %v1254
        %v1256 = vpop.xlane.xlu0 %1255
        %v1257 = vsub.f32 %v1249, %v1256
        %v1258 = vmul.f32 %v1257, 1.442695
        %v1259 = vpow.pop %v1258
        %v1260 = vsel %vm1048, %v1259, 0.0
        %1261 = vadd.xlane.f32.xlu0 %v1260
        %v1262 = vpop.xlane.xlu0 %1261
        %v1263 = vrcp.pop %v1262
        %v1264 = vpack.c.bf16 %v1259, %v1259
        %v1266 = vsel %vm1048, %v1264, 0
        %v1269 = vsel %vm1063, %v1213, 0
        %1271 = vmatprep.subr.bf16.mxu0 0
        %1272 = vmatpush1.bf16.msra.mxu0 %v1269
        %1273 = vmatprep.subr.bf16.mxu0 0
        %1274 = vmatpush1.bf16.msra.mxu0 0
        %1275 = vmatprep.subr.bf16.mxu0 0
        %1276 = vmatpush1.bf16.msra.mxu0 0
        %1277 = vmatprep.subr.bf16.mxu0 0
        %1278 = vmatpush1.bf16.msra.mxu0 0
        %1279 = vmatprep.subr.bf16.mxu0 0
        %1280 = vmatpush1.bf16.msra.mxu0 0
        %1281 = vmatprep.subr.bf16.mxu0 0
        %1282 = vmatpush1.bf16.msra.mxu0 0
        %1283 = vmatprep.subr.bf16.mxu0 0
        %1284 = vmatpush1.bf16.msra.mxu0 0
        %1285 = vmatprep.subr.bf16.mxu0 0
        %1286 = vmatpush1.bf16.msra.mxu0 0
        %1287 = vmatprep.subr.bf16.mxu0 0
        %1288 = vmatpush1.bf16.msra.mxu0 0
        %1289 = vmatprep.subr.bf16.mxu0 0
        %1290 = vmatpush1.bf16.msra.mxu0 0
        %1291 = vmatprep.subr.bf16.mxu0 0
        %1292 = vmatpush1.bf16.msra.mxu0 0
        %1293 = vmatprep.subr.bf16.mxu0 0
        %1294 = vmatpush1.bf16.msra.mxu0 0
        %1295 = vmatprep.subr.bf16.mxu0 0
        %1296 = vmatpush1.bf16.msra.mxu0 0
        %1297 = vmatprep.subr.bf16.mxu0 0
        %1298 = vmatpush1.bf16.msra.mxu0 0
        %1299 = vmatprep.subr.bf16.mxu0 0
        %1300 = vmatpush1.bf16.msra.mxu0 0
        %1301 = vmatprep.subr.bf16.mxu0 0
        %1302 = vmatpush1.bf16.msra.mxu0 0
        %1303 = vmatprep.mubr.bf16.mxu0 0
        %1304 = vmatmul.mubr.bf16.gmra.mrb[0].mxu0 %v1266
        %v1305 = vpop.f32.mrb[0].mxu0
        %v1306 = vadd.f32 0.0, %v1305
        %v1307 = vpop.f32.mrb[0].mxu0
        %v1308 = vpop.f32.mrb[0].mxu0
        %v1309 = vpop.f32.mrb[0].mxu0
        %1310 = vdwg.mxu0
        %v1311 = vmul.f32 %v1306, %v1263
        %1312 = vst [vmem:[#allocation2 + $0x10] sm:$0xff] %v1311
        %v1313 = vpack.c.bf16 %v1001, %v1001
        %v1314 = vpack.c.bf16 %v767, %v767
        %v1315 = vpack.c.bf16 %v849, %v849
        %1316 = vmatprep.subr.bf16.mxu0 0
        %1317 = vmatpush1.bf16.xpose.msra.mxu0 %v1314
        %1318 = vmatprep.subr.bf16.mxu0 0
        %1319 = vmatpush1.bf16.xpose.msra.mxu0 0
        %1320 = vmatprep.subr.bf16.mxu0 0
        %1321 = vmatpush1.bf16.xpose.msra.mxu0 0
        %1322 = vmatprep.subr.bf16.mxu0 0
        %1323 = vmatpush1.bf16.xpose.msra.mxu0 0
        %1324 = vmatprep.subr.bf16.mxu0 0
        %1325 = vmatpush1.bf16.xpose.msra.mxu0 0
        %1326 = vmatprep.subr.bf16.mxu0 0
        %1327 = vmatpush1.bf16.xpose.msra.mxu0 0
        %1328 = vmatprep.subr.bf16.mxu0 0
        %1329 = vmatpush1.bf16.xpose.msra.mxu0 0
        %1330 = vmatprep.subr.bf16.mxu0 0
        %1331 = vmatpush1.bf16.xpose.msra.mxu0 0
        %1332 = vmatprep.subr.bf16.mxu0 0
        %1333 = vmatpush1.bf16.xpose.msra.mxu0 0
        %1334 = vmatprep.subr.bf16.mxu0 0
        %1335 = vmatpush1.bf16.xpose.msra.mxu0 0
        %1336 = vmatprep.subr.bf16.mxu0 0
        %1337 = vmatpush1.bf16.xpose.msra.mxu0 0
        %1338 = vmatprep.subr.bf16.mxu0 0
        %1339 = vmatpush1.bf16.xpose.msra.mxu0 0
        %1340 = vmatprep.subr.bf16.mxu0 0
        %1341 = vmatpush1.bf16.xpose.msra.mxu0 0
        %1342 = vmatprep.subr.bf16.mxu0 0
        %1343 = vmatpush1.bf16.xpose.msra.mxu0 0
        %1344 = vmatprep.subr.bf16.mxu0 0
        %1345 = vmatpush1.bf16.xpose.msra.mxu0 0
        %1346 = vmatprep.subr.bf16.mxu0 0
        %1347 = vmatpush1.bf16.xpose.msra.mxu0 0
        %1348 = vmatprep.mubr.bf16.mxu0 0
        %1349 = vmatmul.mubr.bf16.gmra.mrb[0].mxu0 %v1313
        %v1350 = vpop.f32.mrb[0].mxu0
        %v1351 = vadd.f32 0.0, %v1350
        %v1352 = vpop.f32.mrb[0].mxu0
        %v1353 = vpop.f32.mrb[0].mxu0
        %v1354 = vpop.f32.mrb[0].mxu0
        %1355 = vdwg.mxu0
        %v1356 = vsel %vm1048, %v1351, -inf
        %1357 = vmax.xlane.f32.xlu0 %v1356
        %v1358 = vpop.xlane.xlu0 %1357
        %v1359 = vsub.f32 %v1351, %v1358
        %v1360 = vmul.f32 %v1359, 1.442695
        %v1361 = vpow.pop %v1360
        %v1362 = vsel %vm1048, %v1361, 0.0
        %1363 = vadd.xlane.f32.xlu0 %v1362
        %v1364 = vpop.xlane.xlu0 %1363
        %v1365 = vrcp.pop %v1364
        %v1366 = vpack.c.bf16 %v1361, %v1361
        %v1368 = vsel %vm1048, %v1366, 0
        %v1371 = vsel %vm1063, %v1315, 0
        %1373 = vmatprep.subr.bf16.mxu0 0
        %1374 = vmatpush1.bf16.msra.mxu0 %v1371
        %1375 = vmatprep.subr.bf16.mxu0 0
        %1376 = vmatpush1.bf16.msra.mxu0 0
        %1377 = vmatprep.subr.bf16.mxu0 0
        %1378 = vmatpush1.bf16.msra.mxu0 0
        %1379 = vmatprep.subr.bf16.mxu0 0
        %1380 = vmatpush1.bf16.msra.mxu0 0
        %1381 = vmatprep.subr.bf16.mxu0 0
        %1382 = vmatpush1.bf16.msra.mxu0 0
        %1383 = vmatprep.subr.bf16.mxu0 0
        %1384 = vmatpush1.bf16.msra.mxu0 0
        %1385 = vmatprep.subr.bf16.mxu0 0
        %1386 = vmatpush1.bf16.msra.mxu0 0
        %1387 = vmatprep.subr.bf16.mxu0 0
        %1388 = vmatpush1.bf16.msra.mxu0 0
        %1389 = vmatprep.subr.bf16.mxu0 0
        %1390 = vmatpush1.bf16.msra.mxu0 0
        %1391 = vmatprep.subr.bf16.mxu0 0
        %1392 = vmatpush1.bf16.msra.mxu0 0
        %1393 = vmatprep.subr.bf16.mxu0 0
        %1394 = vmatpush1.bf16.msra.mxu0 0
        %1395 = vmatprep.subr.bf16.mxu0 0
        %1396 = vmatpush1.bf16.msra.mxu0 0
        %1397 = vmatprep.subr.bf16.mxu0 0
        %1398 = vmatpush1.bf16.msra.mxu0 0
        %1399 = vmatprep.subr.bf16.mxu0 0
        %1400 = vmatpush1.bf16.msra.mxu0 0
        %1401 = vmatprep.subr.bf16.mxu0 0
        %1402 = vmatpush1.bf16.msra.mxu0 0
        %1403 = vmatprep.subr.bf16.mxu0 0
        %1404 = vmatpush1.bf16.msra.mxu0 0
        %1405 = vmatprep.mubr.bf16.mxu0 0
        %1406 = vmatmul.mubr.bf16.gmra.mrb[0].mxu0 %v1368
        %v1407 = vpop.f32.mrb[0].mxu0
        %v1408 = vadd.f32 0.0, %v1407
        %v1409 = vpop.f32.mrb[0].mxu0
        %v1410 = vpop.f32.mrb[0].mxu0
        %v1411 = vpop.f32.mrb[0].mxu0
        %1412 = vdwg.mxu0
        %v1413 = vmul.f32 %v1408, %v1365
        %1414 = vst [vmem:[#allocation2 + $0x18] sm:$0xff] %v1413
        %v1415 = vld [vmem:[#allocation2] sm:$0xff]
        %v1416 = vld [vmem:[#allocation2 + $0x8] sm:$0xff]
        %v1417 = vld [vmem:[#allocation2 + $0x10] sm:$0xff]
        %v1418 = vld [vmem:[#allocation2 + $0x18] sm:$0xff]
        %v1419 = vpack.c.bf16 %v1415, %v1415
        %v1420 = vpack.c.bf16 %v1416, %v1416
        %v1421 = vpack.c.bf16 %v1417, %v1417
        %v1422 = vpack.c.bf16 %v1418, %v1418
        %v1423 = vld [vmem:[%s5] sm:$0xf]
        %v1424 = vld [vmem:[%s5 + $0x4] sm:$0xf]
        %v1425 = vld [vmem:[%s5 + $0x8] sm:$0xf]
        %v1426 = vld [vmem:[%s5 + $0xc] sm:$0xf]
        %v1427 = vld [vmem:[%s5 + $0x10] sm:$0xf]
        %v1428 = vld [vmem:[%s5 + $0x14] sm:$0xf]
        %v1429 = vld [vmem:[%s5 + $0x18] sm:$0xf]
        %v1430 = vld [vmem:[%s5 + $0x1c] sm:$0xf]
        %v1431 = vld [vmem:[%s5 + $0x20] sm:$0xf]
        %v1432 = vld [vmem:[%s5 + $0x24] sm:$0xf]
        %v1433 = vld [vmem:[%s5 + $0x28] sm:$0xf]
        %v1434 = vld [vmem:[%s5 + $0x2c] sm:$0xf]
        %v1435 = vld [vmem:[%s5 + $0x30] sm:$0xf]
        %v1436 = vld [vmem:[%s5 + $0x34] sm:$0xf]
        %v1437 = vld [vmem:[%s5 + $0x38] sm:$0xf]
        %v1438 = vld [vmem:[%s5 + $0x3c] sm:$0xf]
        %v1439 = vld [vmem:[%s5 + $0x40] sm:$0xf]
        %v1440 = vld [vmem:[%s5 + $0x44] sm:$0xf]
        %v1441 = vld [vmem:[%s5 + $0x48] sm:$0xf]
        %v1442 = vld [vmem:[%s5 + $0x4c] sm:$0xf]
        %v1443 = vld [vmem:[%s5 + $0x50] sm:$0xf]
        %v1444 = vld [vmem:[%s5 + $0x54] sm:$0xf]
        %v1445 = vld [vmem:[%s5 + $0x58] sm:$0xf]
        %v1446 = vld [vmem:[%s5 + $0x5c] sm:$0xf]
        %v1447 = vld [vmem:[%s5 + $0x60] sm:$0xf]
        %v1448 = vld [vmem:[%s5 + $0x64] sm:$0xf]
        %v1449 = vld [vmem:[%s5 + $0x68] sm:$0xf]
        %v1450 = vld [vmem:[%s5 + $0x6c] sm:$0xf]
        %v1451 = vld [vmem:[%s5 + $0x70] sm:$0xf]
        %v1452 = vld [vmem:[%s5 + $0x74] sm:$0xf]
        %v1453 = vld [vmem:[%s5 + $0x78] sm:$0xf]
        %v1454 = vld [vmem:[%s5 + $0x7c] sm:$0xf]
        %v1455 = vld [vmem:[%s5 + $0x80] sm:$0xf]
        %v1456 = vld [vmem:[%s5 + $0x84] sm:$0xf]
        %v1457 = vld [vmem:[%s5 + $0x88] sm:$0xf]
        %v1458 = vld [vmem:[%s5 + $0x8c] sm:$0xf]
        %v1459 = vld [vmem:[%s5 + $0x90] sm:$0xf]
        %v1460 = vld [vmem:[%s5 + $0x94] sm:$0xf]
        %v1461 = vld [vmem:[%s5 + $0x98] sm:$0xf]
        %v1462 = vld [vmem:[%s5 + $0x9c] sm:$0xf]
        %v1463 = vld [vmem:[%s5 + $0xa0] sm:$0xf]
        %v1464 = vld [vmem:[%s5 + $0xa4] sm:$0xf]
        %v1465 = vld [vmem:[%s5 + $0xa8] sm:$0xf]
        %v1466 = vld [vmem:[%s5 + $0xac] sm:$0xf]
        %v1467 = vld [vmem:[%s5 + $0xb0] sm:$0xf]
        %v1468 = vld [vmem:[%s5 + $0xb4] sm:$0xf]
        %v1469 = vld [vmem:[%s5 + $0xb8] sm:$0xf]
        %v1470 = vld [vmem:[%s5 + $0xbc] sm:$0xf]
        %v1471 = vld [vmem:[%s5 + $0xc0] sm:$0xf]
        %v1472 = vld [vmem:[%s5 + $0xc4] sm:$0xf]
        %v1473 = vld [vmem:[%s5 + $0xc8] sm:$0xf]
        %v1474 = vld [vmem:[%s5 + $0xcc] sm:$0xf]
        %v1475 = vld [vmem:[%s5 + $0xd0] sm:$0xf]
        %v1476 = vld [vmem:[%s5 + $0xd4] sm:$0xf]
        %v1477 = vld [vmem:[%s5 + $0xd8] sm:$0xf]
        %v1478 = vld [vmem:[%s5 + $0xdc] sm:$0xf]
        %v1479 = vld [vmem:[%s5 + $0xe0] sm:$0xf]
        %v1480 = vld [vmem:[%s5 + $0xe4] sm:$0xf]
        %v1481 = vld [vmem:[%s5 + $0xe8] sm:$0xf]
        %v1482 = vld [vmem:[%s5 + $0xec] sm:$0xf]
        %v1483 = vld [vmem:[%s5 + $0xf0] sm:$0xf]
        %v1484 = vld [vmem:[%s5 + $0xf4] sm:$0xf]
        %v1485 = vld [vmem:[%s5 + $0xf8] sm:$0xf]
        %v1486 = vld [vmem:[%s5 + $0xfc] sm:$0xf]
        %v1551 = vunpack.c.l.b16 %v1423
        %v1552 = vunpack.c.l.b16 %v1424
        %v1553 = vunpack.c.l.b16 %v1425
        %v1554 = vunpack.c.l.b16 %v1426
        %v1555 = vunpack.c.l.b16 %v1427
        %v1556 = vunpack.c.l.b16 %v1428
        %v1557 = vunpack.c.l.b16 %v1429
        %v1558 = vunpack.c.l.b16 %v1430
        %v1559 = vunpack.c.l.b16 %v1431
        %v1560 = vunpack.c.l.b16 %v1432
        %v1561 = vunpack.c.l.b16 %v1433
        %v1562 = vunpack.c.l.b16 %v1434
        %v1563 = vunpack.c.l.b16 %v1435
        %v1564 = vunpack.c.l.b16 %v1436
        %v1565 = vunpack.c.l.b16 %v1437
        %v1566 = vunpack.c.l.b16 %v1438
        %v1567 = vunpack.c.l.b16 %v1439
        %v1568 = vunpack.c.l.b16 %v1440
        %v1569 = vunpack.c.l.b16 %v1441
        %v1570 = vunpack.c.l.b16 %v1442
        %v1571 = vunpack.c.l.b16 %v1443
        %v1572 = vunpack.c.l.b16 %v1444
        %v1573 = vunpack.c.l.b16 %v1445
        %v1574 = vunpack.c.l.b16 %v1446
        %v1575 = vunpack.c.l.b16 %v1447
        %v1576 = vunpack.c.l.b16 %v1448
        %v1577 = vunpack.c.l.b16 %v1449
        %v1578 = vunpack.c.l.b16 %v1450
        %v1579 = vunpack.c.l.b16 %v1451
        %v1580 = vunpack.c.l.b16 %v1452
        %v1581 = vunpack.c.l.b16 %v1453
        %v1582 = vunpack.c.l.b16 %v1454
        %v1583 = vunpack.c.l.b16 %v1455
        %v1584 = vunpack.c.l.b16 %v1456
        %v1585 = vunpack.c.l.b16 %v1457
        %v1586 = vunpack.c.l.b16 %v1458
        %v1587 = vunpack.c.l.b16 %v1459
        %v1588 = vunpack.c.l.b16 %v1460
        %v1589 = vunpack.c.l.b16 %v1461
        %v1590 = vunpack.c.l.b16 %v1462
        %v1591 = vunpack.c.l.b16 %v1463
        %v1592 = vunpack.c.l.b16 %v1464
        %v1593 = vunpack.c.l.b16 %v1465
        %v1594 = vunpack.c.l.b16 %v1466
        %v1595 = vunpack.c.l.b16 %v1467
        %v1596 = vunpack.c.l.b16 %v1468
        %v1597 = vunpack.c.l.b16 %v1469
        %v1598 = vunpack.c.l.b16 %v1470
        %v1599 = vunpack.c.l.b16 %v1471
        %v1600 = vunpack.c.l.b16 %v1472
        %v1601 = vunpack.c.l.b16 %v1473
        %v1602 = vunpack.c.l.b16 %v1474
        %v1603 = vunpack.c.l.b16 %v1475
        %v1604 = vunpack.c.l.b16 %v1476
        %v1605 = vunpack.c.l.b16 %v1477
        %v1606 = vunpack.c.l.b16 %v1478
        %v1607 = vunpack.c.l.b16 %v1479
        %v1608 = vunpack.c.l.b16 %v1480
        %v1609 = vunpack.c.l.b16 %v1481
        %v1610 = vunpack.c.l.b16 %v1482
        %v1611 = vunpack.c.l.b16 %v1483
        %v1612 = vunpack.c.l.b16 %v1484
        %v1613 = vunpack.c.l.b16 %v1485
        %v1614 = vunpack.c.l.b16 %v1486
        %v1615 = vpack.c.b16 %v1552, %v1551
        %v1616 = vpack.c.b16 %v1554, %v1553
        %v1617 = vpack.c.b16 %v1556, %v1555
        %v1618 = vpack.c.b16 %v1558, %v1557
        %v1619 = vpack.c.b16 %v1560, %v1559
        %v1620 = vpack.c.b16 %v1562, %v1561
        %v1621 = vpack.c.b16 %v1564, %v1563
        %v1622 = vpack.c.b16 %v1566, %v1565
        %v1623 = vpack.c.b16 %v1568, %v1567
        %v1624 = vpack.c.b16 %v1570, %v1569
        %v1625 = vpack.c.b16 %v1572, %v1571
        %v1626 = vpack.c.b16 %v1574, %v1573
        %v1627 = vpack.c.b16 %v1576, %v1575
        %v1628 = vpack.c.b16 %v1578, %v1577
        %v1629 = vpack.c.b16 %v1580, %v1579
        %v1630 = vpack.c.b16 %v1582, %v1581
        %v1631 = vpack.c.b16 %v1584, %v1583
        %v1632 = vpack.c.b16 %v1586, %v1585
        %v1633 = vpack.c.b16 %v1588, %v1587
        %v1634 = vpack.c.b16 %v1590, %v1589
        %v1635 = vpack.c.b16 %v1592, %v1591
        %v1636 = vpack.c.b16 %v1594, %v1593
        %v1637 = vpack.c.b16 %v1596, %v1595
        %v1638 = vpack.c.b16 %v1598, %v1597
        %v1639 = vpack.c.b16 %v1600, %v1599
        %v1640 = vpack.c.b16 %v1602, %v1601
        %v1641 = vpack.c.b16 %v1604, %v1603
        %v1642 = vpack.c.b16 %v1606, %v1605
        %v1643 = vpack.c.b16 %v1608, %v1607
        %v1644 = vpack.c.b16 %v1610, %v1609
        %v1645 = vpack.c.b16 %v1612, %v1611
        %v1646 = vpack.c.b16 %v1614, %v1613
        %1679 = vmatprep.subr.bf16.mxu0 0
        %1680 = vmatpush1.bf16.msra.mxu0 %v1615
        %1681 = vmatprep.subr.bf16.mxu0 0
        %1682 = vmatpush1.bf16.msra.mxu0 %v1616
        %1683 = vmatprep.subr.bf16.mxu0 0
        %1684 = vmatpush1.bf16.msra.mxu0 %v1617
        %1685 = vmatprep.subr.bf16.mxu0 0
        %1686 = vmatpush1.bf16.msra.mxu0 %v1618
        %1687 = vmatprep.subr.bf16.mxu0 0
        %1688 = vmatpush1.bf16.msra.mxu0 %v1619
        %1689 = vmatprep.subr.bf16.mxu0 0
        %1690 = vmatpush1.bf16.msra.mxu0 %v1620
        %1691 = vmatprep.subr.bf16.mxu0 0
        %1692 = vmatpush1.bf16.msra.mxu0 %v1621
        %1693 = vmatprep.subr.bf16.mxu0 0
        %1694 = vmatpush1.bf16.msra.mxu0 %v1622
        %1695 = vmatprep.subr.bf16.mxu0 0
        %1696 = vmatpush1.bf16.msra.mxu0 %v1623
        %1697 = vmatprep.subr.bf16.mxu0 0
        %1698 = vmatpush1.bf16.msra.mxu0 %v1624
        %1699 = vmatprep.subr.bf16.mxu0 0
        %1700 = vmatpush1.bf16.msra.mxu0 %v1625
        %1701 = vmatprep.subr.bf16.mxu0 0
        %1702 = vmatpush1.bf16.msra.mxu0 %v1626
        %1703 = vmatprep.subr.bf16.mxu0 0
        %1704 = vmatpush1.bf16.msra.mxu0 %v1627
        %1705 = vmatprep.subr.bf16.mxu0 0
        %1706 = vmatpush1.bf16.msra.mxu0 %v1628
        %1707 = vmatprep.subr.bf16.mxu0 0
        %1708 = vmatpush1.bf16.msra.mxu0 %v1629
        %1709 = vmatprep.subr.bf16.mxu0 0
        %1710 = vmatpush1.bf16.msra.mxu0 %v1630
        %1711 = vmatprep.mubr.bf16.mxu0 %v1420
        %1712 = vmatmul.mubr.bf16.gmra.mrb[0].mxu0 %v1419
        %v1713 = vpop.f32.mrb[0].mxu0
        %v1714 = vadd.f32 0.0, %v1713
        %v1715 = vpop.f32.mrb[0].mxu0
        %v1716 = vpop.f32.mrb[0].mxu0
        %v1717 = vpop.f32.mrb[0].mxu0
        %1718 = vdwg.mxu0
        %1719 = vmatprep.subr.bf16.mxu0 0
        %1720 = vmatpush1.bf16.msra.mxu0 %v1631
        %1721 = vmatprep.subr.bf16.mxu0 0
        %1722 = vmatpush1.bf16.msra.mxu0 %v1632
        %1723 = vmatprep.subr.bf16.mxu0 0
        %1724 = vmatpush1.bf16.msra.mxu0 %v1633
        %1725 = vmatprep.subr.bf16.mxu0 0
        %1726 = vmatpush1.bf16.msra.mxu0 %v1634
        %1727 = vmatprep.subr.bf16.mxu0 0
        %1728 = vmatpush1.bf16.msra.mxu0 %v1635
        %1729 = vmatprep.subr.bf16.mxu0 0
        %1730 = vmatpush1.bf16.msra.mxu0 %v1636
        %1731 = vmatprep.subr.bf16.mxu0 0
        %1732 = vmatpush1.bf16.msra.mxu0 %v1637
        %1733 = vmatprep.subr.bf16.mxu0 0
        %1734 = vmatpush1.bf16.msra.mxu0 %v1638
        %1735 = vmatprep.subr.bf16.mxu0 0
        %1736 = vmatpush1.bf16.msra.mxu0 %v1639
        %1737 = vmatprep.subr.bf16.mxu0 0
        %1738 = vmatpush1.bf16.msra.mxu0 %v1640
        %1739 = vmatprep.subr.bf16.mxu0 0
        %1740 = vmatpush1.bf16.msra.mxu0 %v1641
        %1741 = vmatprep.subr.bf16.mxu0 0
        %1742 = vmatpush1.bf16.msra.mxu0 %v1642
        %1743 = vmatprep.subr.bf16.mxu0 0
        %1744 = vmatpush1.bf16.msra.mxu0 %v1643
        %1745 = vmatprep.subr.bf16.mxu0 0
        %1746 = vmatpush1.bf16.msra.mxu0 %v1644
        %1747 = vmatprep.subr.bf16.mxu0 0
        %1748 = vmatpush1.bf16.msra.mxu0 %v1645
        %1749 = vmatprep.subr.bf16.mxu0 0
        %1750 = vmatpush1.bf16.msra.mxu0 %v1646
        %1751 = vmatprep.mubr.bf16.mxu0 %v1422
        %1752 = vmatmul.mubr.bf16.gmra.mrb[0].mxu0 %v1421
        %v1753 = vpop.f32.mrb[0].mxu0
        %v1754 = vadd.f32 %v1714, %v1753
        %v1755 = vpop.f32.mrb[0].mxu0
        %v1756 = vpop.f32.mrb[0].mxu0
        %v1757 = vpop.f32.mrb[0].mxu0
        %1758 = vdwg.mxu0
        %v1759 = vadd.f32 %v505, %v1754
        %v1760 = vld [vmem:[%s6] sm:$0x1]
        %v1762 = vlaneseq
        %v1763 = vshrl.u32 %v1762, 7
        %v1764 = vsub.s32 0, %v1763
        %v1765 = vrot.slane %v1760, %v1764
        %v1767 = vadd.f32 %v1759, %v1765
        %v1768 = vsel %vm510, %v1767, 0.0
        %1769 = vadd.xlane.f32.xlu0 %v1768
        %v1770 = vpop.xlane.xlu0 %1769
        %v1771 = vmul.f32 %v1770, %v514
        %v1772 = vsub.f32 %v1767, %v1771
        %v1773 = vmul.f32 %v1772, %v1772
        %v1774 = vsel %vm510, %v1773, 0.0
        %1775 = vadd.xlane.f32.xlu0 %v1774
        %v1776 = vpop.xlane.xlu0 %1775
        %v1777 = vmul.f32 %v1776, 0.032258064
        %v1778 = vrsqrt.pop %v1777
        %v1779 = vmul.f32 %v1777, %v1778
        %vm1780 = vcmp.eq.f32.partialorder %v1777, inf
        %v1781 = vsel %vm1780, %v1777, %v1779
        %vm1782 = vcmp.eq.f32.partialorder %v1777, 0.0
        %v1783 = vand.u32 %v1777, 2147483648
        %v1784 = vsel %vm1782, %v1783, %v1781
        %v1785 = vadd.f32 %v1784, 1e-06
        %v1786 = vrcp.pop %v1785
        %v1787 = vmul.f32 1.0, %v1786
        %v1789 = vlaneseq
        %v1790 = vshrl.u32 %v1789, 7
        %v1791 = vsub.s32 0, %v1790
        %v1792 = vrot.slane %v508, %v1791
        %v1794 = vmul.f32 %v1792, %v1787
        %v1795 = vmul.f32 %v1772, %v1794
        %v1797 = vlaneseq
        %v1798 = vshrl.u32 %v1797, 7
        %v1799 = vsub.s32 0, %v1798
        %v1800 = vrot.slane %v509, %v1799
        %v1802 = vadd.f32 %v1795, %v1800
        %v1803 = vpack.c.bf16 %v1802, %v1802
        %v1804 = vld [vmem:[%s7] sm:$0xf]
        %v1805 = vld [vmem:[%s7 + $0x4] sm:$0xf]
        %v1806 = vld [vmem:[%s7 + $0x8] sm:$0xf]
        %v1807 = vld [vmem:[%s7 + $0xc] sm:$0xf]
        %v1808 = vld [vmem:[%s8] sm:$0x1]
        %v1810 = vlaneseq
        %v1811 = vshrl.u32 %v1810, 7
        %v1812 = vsub.s32 0, %v1811
        %v1813 = vrot.slane %v1808, %v1812
        %v1819 = vunpack.c.l.b16 %v1804
        %v1820 = vunpack.c.l.b16 %v1805
        %v1821 = vunpack.c.l.b16 %v1806
        %v1822 = vunpack.c.l.b16 %v1807
        %v1823 = vpack.c.b16 %v1820, %v1819
        %v1824 = vpack.c.b16 %v1822, %v1821
        %v1828 = vsel %vm510, %v1803, 0
        %1830 = vmatprep.subr.bf16.mxu0 0
        %1831 = vmatpush1.bf16.msra.mxu0 %v1823
        %1832 = vmatprep.subr.bf16.mxu0 0
        %1833 = vmatpush1.bf16.msra.mxu0 %v1824
        %1834 = vmatprep.subr.bf16.mxu0 0
        %1835 = vmatpush1.bf16.msra.mxu0 0
        %1836 = vmatprep.subr.bf16.mxu0 0
        %1837 = vmatpush1.bf16.msra.mxu0 0
        %1838 = vmatprep.subr.bf16.mxu0 0
        %1839 = vmatpush1.bf16.msra.mxu0 0
        %1840 = vmatprep.subr.bf16.mxu0 0
        %1841 = vmatpush1.bf16.msra.mxu0 0
        %1842 = vmatprep.subr.bf16.mxu0 0
        %1843 = vmatpush1.bf16.msra.mxu0 0
        %1844 = vmatprep.subr.bf16.mxu0 0
        %1845 = vmatpush1.bf16.msra.mxu0 0
        %1846 = vmatprep.subr.bf16.mxu0 0
        %1847 = vmatpush1.bf16.msra.mxu0 0
        %1848 = vmatprep.subr.bf16.mxu0 0
        %1849 = vmatpush1.bf16.msra.mxu0 0
        %1850 = vmatprep.subr.bf16.mxu0 0
        %1851 = vmatpush1.bf16.msra.mxu0 0
        %1852 = vmatprep.subr.bf16.mxu0 0
        %1853 = vmatpush1.bf16.msra.mxu0 0
        %1854 = vmatprep.subr.bf16.mxu0 0
        %1855 = vmatpush1.bf16.msra.mxu0 0
        %1856 = vmatprep.subr.bf16.mxu0 0
        %1857 = vmatpush1.bf16.msra.mxu0 0
        %1858 = vmatprep.subr.bf16.mxu0 0
        %1859 = vmatpush1.bf16.msra.mxu0 0
        %1860 = vmatprep.subr.bf16.mxu0 0
        %1861 = vmatpush1.bf16.msra.mxu0 0
        %1862 = vmatprep.mubr.bf16.mxu0 0
        %1863 = vmatmul.mubr.bf16.gmra.mrb[0].mxu0 %v1828
        %v1864 = vpop.f32.mrb[0].mxu0
        %v1865 = vadd.f32 %v1813, %v1864
        %v1866 = vpop.f32.mrb[0].mxu0
        %v1867 = vpop.f32.mrb[0].mxu0
        %v1868 = vpop.f32.mrb[0].mxu0
        %1869 = vdwg.mxu0
        %v1870 = vmax.f32 %v1865, 0.0
        %v1871 = vpack.c.bf16 %v1870, %v1870
        %v1872 = vld [vmem:[%s9] sm:$0xf]
        %v1873 = vld [vmem:[%s9 + $0x4] sm:$0xf]
        %v1874 = vld [vmem:[%s9 + $0x8] sm:$0xf]
        %v1875 = vld [vmem:[%s9 + $0xc] sm:$0xf]
        %v1876 = vld [vmem:[%s9 + $0x10] sm:$0xf]
        %v1877 = vld [vmem:[%s9 + $0x14] sm:$0xf]
        %v1878 = vld [vmem:[%s9 + $0x18] sm:$0xf]
        %v1879 = vld [vmem:[%s9 + $0x1c] sm:$0xf]
        %v1888 = vunpack.c.l.b16 %v1872
        %v1889 = vunpack.c.l.b16 %v1873
        %v1890 = vunpack.c.l.b16 %v1874
        %v1891 = vunpack.c.l.b16 %v1875
        %v1892 = vunpack.c.l.b16 %v1876
        %v1893 = vunpack.c.l.b16 %v1877
        %v1894 = vunpack.c.l.b16 %v1878
        %v1895 = vunpack.c.l.b16 %v1879
        %v1896 = vpack.c.b16 %v1889, %v1888
        %v1897 = vpack.c.b16 %v1891, %v1890
        %v1898 = vpack.c.b16 %v1893, %v1892
        %v1899 = vpack.c.b16 %v1895, %v1894
        %vm1904 = vcmask 523264
        %v1906 = vsel %vm1904, %v1871, 0
        %1908 = vmatprep.subr.bf16.mxu0 0
        %1909 = vmatpush1.bf16.msra.mxu0 %v1896
        %1910 = vmatprep.subr.bf16.mxu0 0
        %1911 = vmatpush1.bf16.msra.mxu0 %v1897
        %1912 = vmatprep.subr.bf16.mxu0 0
        %1913 = vmatpush1.bf16.msra.mxu0 %v1898
        %1914 = vmatprep.subr.bf16.mxu0 0
        %1915 = vmatpush1.bf16.msra.mxu0 %v1899
        %1916 = vmatprep.subr.bf16.mxu0 0
        %1917 = vmatpush1.bf16.msra.mxu0 0
        %1918 = vmatprep.subr.bf16.mxu0 0
        %1919 = vmatpush1.bf16.msra.mxu0 0
        %1920 = vmatprep.subr.bf16.mxu0 0
        %1921 = vmatpush1.bf16.msra.mxu0 0
        %1922 = vmatprep.subr.bf16.mxu0 0
        %1923 = vmatpush1.bf16.msra.mxu0 0
        %1924 = vmatprep.subr.bf16.mxu0 0
        %1925 = vmatpush1.bf16.msra.mxu0 0
        %1926 = vmatprep.subr.bf16.mxu0 0
        %1927 = vmatpush1.bf16.msra.mxu0 0
        %1928 = vmatprep.subr.bf16.mxu0 0
        %1929 = vmatpush1.bf16.msra.mxu0 0
        %1930 = vmatprep.subr.bf16.mxu0 0
        %1931 = vmatpush1.bf16.msra.mxu0 0
        %1932 = vmatprep.subr.bf16.mxu0 0
        %1933 = vmatpush1.bf16.msra.mxu0 0
        %1934 = vmatprep.subr.bf16.mxu0 0
        %1935 = vmatpush1.bf16.msra.mxu0 0
        %1936 = vmatprep.subr.bf16.mxu0 0
        %1937 = vmatpush1.bf16.msra.mxu0 0
        %1938 = vmatprep.subr.bf16.mxu0 0
        %1939 = vmatpush1.bf16.msra.mxu0 0
        %1940 = vmatprep.mubr.bf16.mxu0 0
        %1941 = vmatmul.mubr.bf16.gmra.mrb[0].mxu0 %v1906
        %v1942 = vpop.f32.mrb[0].mxu0
        %v1943 = vadd.f32 0.0, %v1942
        %v1944 = vpop.f32.mrb[0].mxu0
        %v1945 = vpop.f32.mrb[0].mxu0
        %v1946 = vpop.f32.mrb[0].mxu0
        %1947 = vdwg.mxu0
        %v1948 = vadd.f32 %v1767, %v1943
        %v1949 = vld [vmem:[%s10] sm:$0x1]
        %v1951 = vlaneseq
        %v1952 = vshrl.u32 %v1951, 7
        %v1953 = vsub.s32 0, %v1952
        %v1954 = vrot.slane %v1949, %v1953
        %v1956 = vadd.f32 %v1948, %v1954
        %1957 = vst.msk [vmem:[%s499] sm:$0xff] %vm510, %v1956
        %s1958 = sand.u32 %s371, 1
        %s1959 = scalar_lea.sflag [#allocation4], %s1958
        %s1960 = sand.u32 %s371, 1
        %s1961 = smul.addr %s1960, 8
        %s1962 = scalar_lea.vmem [#allocation3], %s1961
        // Predicated region
        $region81: #{tpu_custom_call.1} parent=79 // pred_check
          %p1963 = pneg %p381
        $region82: #{tpu_custom_call.1} parent=79 // pred_check_branch
          %1965 = sbr.rel (%p1963) target = $region84
        $region83: #{tpu_custom_call.1} parent=79 // pred_region
          %s1967 = ssub.s32 128, 128
          %1968 = vsyncadd %s1959, %s1967
          %s1969 = sadd.s32 %s34, %s33
          %s1970 = smul.addr %s1969, 128
          %s1971 = scalar_lea.hbm %s15, %s1970
          %s1973 = sshll.u32 %s1962, 4
          %s1974 = int_to_ptr.vmem [resolvable:$true] %s1973
          %1976 = dma.vmem_to_hbm [thread:$0]  %s1974, 128, %s1971, %s1959
        $region84: #{tpu_custom_call.1} parent=79 // pred_fallthru
          _
      $region80: #{tpu_custom_call.1} parent=5 // pred_fallthru
        _
      %p1977 = scmp.le.s32.totalorder 2, %s24
      // Predicated region
      $region85: #{tpu_custom_call.1} parent=5 // pred_check
        %p1978 = pneg %p1977
      $region86: #{tpu_custom_call.1} parent=5 // pred_check_branch
        %1980 = sbr.rel (%p1978) target = $region88
      $region87: #{tpu_custom_call.1} parent=5 // pred_region
        %s1981 = ssub.s32 %s24, 2
        // Predicated region
        $region89: #{tpu_custom_call.1} parent=87 // pred_check
          %p1982 = pneg %p387
        $region90: #{tpu_custom_call.1} parent=87 // pred_check_branch
          %1984 = sbr.rel (%p1982) target = $region92
        $region91: #{tpu_custom_call.1} parent=87 // pred_region
          %s1985 = sand.u32 %s372, 1
          %s1986 = scalar_lea.sflag [#allocation4], %s1985
          %s1987 = sand.u32 %s372, 1
          %s1988 = smul.addr %s1987, 8
          %s1989 = scalar_lea.vmem [#allocation3], %s1988
          %1990 = dma.done %s1986, 128
        $region92: #{tpu_custom_call.1} parent=87 // pred_fallthru
          _
      $region88: #{tpu_custom_call.1} parent=5 // pred_fallthru
        _
    $region6: #{tpu_custom_call.1} parent=1 // loop_footer
      %s28 = sadd.s32 1, %s24
    $region7: #{tpu_custom_call.1} parent=1 // loop_footer_branch
      %23 = sbr.rel target = $region3
    $region8: #{tpu_custom_call.1} parent=1 // loop_exit
      _
    %1991 = vsyncpa [#allocation4], 1
    %s1992 = scalar_lea.sflag [#allocation4], 1
    %1993 = vsyncpa %s1992, 1

</llo_original>
